<compile_context>
chip_gen: v5e
topology: v5e:2x2
jax: 0.10.0
libtpu: 0.0.40
codegen_flags: <defaults>
</compile_context>

<pallas_src>
import math

import jax
import jax.numpy as jnp
from jax.experimental import pallas as pl
from jax.experimental.pallas import tpu as pltpu

BN_EPS = 1e-5
IN_FEATURES = 880
HIDDEN = (512, 256, 128, 64)
ATT_DIM = 64

# Packed-bias layout (each segment starts at a 128-lane-aligned offset):
#   fc1(512) fc2(256) fc3(128) fc4(64) tail(1)
_BIAS_WIDTHS = (512, 256, 128, 64, 1)
_BIAS_OFFSETS = (0, 512, 768, 896, 1024)
BIAS_PACK = 1152

MAX_BATCH_BLOCK = 1024   # per-tile row cap; keeps v7x (64 MiB VMEM) comfortable


def _round_up(n, m):
    return -(-n // m) * m


def _mxu_dot(h, w_ref):
    """Activations -> bf16 MXU operands, f32 accumulation."""
    return jnp.dot(h.astype(jnp.bfloat16), w_ref[...],
                   preferred_element_type=jnp.float32)


def mlp_att_kernel(x_ref, w1, w2, w3, w4, w_tail, bias_ref, out_ref):
    def bias(i):
        off, width = _BIAS_OFFSETS[i], _BIAS_WIDTHS[i]
        return bias_ref[:, off:off + width]             # (1, width) f32

    h = x_ref[...]                                      # (TB, 880)

    # fc -> (folded) BN -> ReLU ; dropout is identity in eval mode.
    # TODO(synk): dropout (p=0.46) uses inference semantics (identity); no RNG here.
    h = jnp.maximum(_mxu_dot(h, w1) + bias(0), 0.0)     # (TB, 512)
    h = jnp.maximum(_mxu_dot(h, w2) + bias(1), 0.0)     # (TB, 256)
    h = jnp.maximum(_mxu_dot(h, w3) + bias(2), 0.0)     # (TB, 128)
    h = jnp.maximum(_mxu_dot(h, w4) + bias(3), 0.0)     # (TB, 64)

    # Attention over a length-1 sequence: softmax over a single element == 1.0
    # exactly, so q/k/scores are dead code and attn == value(h). The value
    # projection is further folded into the output head (w_tail = wv @ wo) on the
    # host since there is no nonlinearity between them.
    logits = _mxu_dot(h, w_tail) + bias(4)              # (TB, 1)
    out_ref[...] = jax.nn.sigmoid(logits)


def prepare_params(params):
    """One-time host prep: fold eval-mode BN into the preceding Linear, fold the
    value projection into the output head, cast weights to bf16, pack biases into
    one lane-aligned array.  Call once and reuse the result across forward calls."""
    p = list(params)

    def pop(n):
        vals = p[:n]
        del p[:n]
        return vals

    weights, biases = [], []
    for _ in range(4):
        w, b, g, be, m, v = pop(6)
        scale = g * jax.lax.rsqrt(v + BN_EPS)           # (1, out)
        weights.append((w * scale).astype(jnp.bfloat16))
        biases.append(((b - m) * scale + be).astype(jnp.float32))

    _wq, _bq, _wk, _bk, wv, bv = pop(6)                 # q/k are provably unused
    wo, bo = pop(2)
    # Fold in f32, cast ONCE to bf16 (avoids double bf16 rounding).
    w_tail = (wv @ wo).astype(jnp.bfloat16)             # (64, 1)
    b_tail = (bv @ wo + bo).astype(jnp.float32)         # (1, 1)
    weights.append(w_tail)
    biases.append(b_tail)

    bias_pack = jnp.zeros((1, BIAS_PACK), jnp.float32)
    for off, width, bvec in zip(_BIAS_OFFSETS, _BIAS_WIDTHS, biases):
        bias_pack = bias_pack.at[:, off:off + width].set(bvec)
    return tuple(weights) + (bias_pack,)


def mlp_att_forward(x, prepared):
    """x: (B, 880) f32 or bf16; prepared: output of prepare_params()."""
    w1, w2, w3, w4, w_tail, bias_pack = prepared
    B = x.shape[0]

    # Batch tiling: cap tiles at MAX_BATCH_BLOCK rows, prefer >= 2 roughly equal
    # grid steps (so the "parallel" axis shards across both v7x TensorCores) and
    # split evenly to minimize padding.
    B8 = _round_up(B, 8)
    n_tiles = pl.cdiv(B8, MAX_BATCH_BLOCK)
    if B8 >= 16:
        n_tiles = max(n_tiles, 2)
    tb = _round_up(pl.cdiv(B8, n_tiles), 8)
    grid = pl.cdiv(B8, tb)
    Bp = grid * tb
    if Bp != B:
        # TODO(synk): feature dim stays at 880 (not padded to 896); padding x per
        # call would add an extra HBM pass over the activations, which is the
        # binding resource on v6e/v7x. Padded batch rows are sliced off below.
        x = jnp.pad(x, ((0, Bp - B), (0, 0)))

    weight_bytes = sum(int(w.size) * w.dtype.itemsize
                       for w in (w1, w2, w3, w4, w_tail))
    flops = 2 * Bp * (IN_FEATURES * 512 + 512 * 256 + 256 * 128 + 128 * 64 + 64 * 1)
    bytes_accessed = (weight_bytes + BIAS_PACK * 4
                      + Bp * IN_FEATURES * x.dtype.itemsize + Bp * 4)

    def full_spec(shape):
        return pl.BlockSpec(shape, lambda i: (0, 0))

    out = pl.pallas_call(
        mlp_att_kernel,
        out_shape=jax.ShapeDtypeStruct((Bp, 1), jnp.float32),
        grid=(grid,),
        in_specs=[
            pl.BlockSpec((tb, IN_FEATURES), lambda i: (i, 0)),   # activations
            full_spec(w1.shape),                                 # weights stay
            full_spec(w2.shape),                                 # VMEM-resident
            full_spec(w3.shape),                                 # across batch
            full_spec(w4.shape),                                 # tiles
            full_spec(w_tail.shape),
            pl.BlockSpec((1, BIAS_PACK), lambda i: (0, 0)),      # packed biases
        ],
        out_specs=pl.BlockSpec((tb, 1), lambda i: (i, 0)),
        compiler_params=pltpu.CompilerParams(
            dimension_semantics=("parallel",),
            vmem_limit_bytes=48 * 1024 * 1024),
        cost_estimate=pl.CostEstimate(
            flops=flops, transcendentals=Bp, bytes_accessed=bytes_accessed),
    )(x, w1, w2, w3, w4, w_tail, bias_pack)
    return out[:B]


def init_params(key):
    """Deterministic synthetic parameters matching the PyTorch module shapes."""
    keys = iter(jax.random.split(key, 32))

    def linear_params(fan_in, fan_out):
        bound = 1.0 / math.sqrt(fan_in)
        w = jax.random.uniform(next(keys), (fan_in, fan_out), jnp.float32, -bound, bound)
        b = jax.random.uniform(next(keys), (1, fan_out), jnp.float32, -bound, bound)
        return w, b

    def bn_params(n):
        g = jax.random.uniform(next(keys), (1, n), jnp.float32, 0.5, 1.5)
        be = jax.random.uniform(next(keys), (1, n), jnp.float32, -0.5, 0.5)
        m = 0.1 * jax.random.normal(next(keys), (1, n), jnp.float32)
        v = jax.random.uniform(next(keys), (1, n), jnp.float32, 0.5, 1.5)
        return g, be, m, v

    params = []
    dims = [IN_FEATURES] + list(HIDDEN)
    for i in range(4):                       # fc1..fc4 + bn1..bn4
        w, b = linear_params(dims[i], dims[i + 1])
        params += [w, b, *bn_params(dims[i + 1])]
    for _ in range(3):                       # attention query / key / value
        w, b = linear_params(ATT_DIM, ATT_DIM)
        params += [w, b]
    w, b = linear_params(ATT_DIM, 1)         # output head
    params += [w, b]
    return params


def reference_forward(x, params):
    """Pure-JAX f32 reference (full original module semantics, eval mode)."""
    p = list(params)

    def pop(n):
        vals = p[:n]
        del p[:n]
        return vals

    h = x
    for _ in range(4):
        w, b, g, be, m, v = pop(6)
        h = h @ w + b
        h = (h - m) * (g * jax.lax.rsqrt(v + BN_EPS)) + be
        h = jnp.maximum(h, 0.0)
    wq, bq, wk, bk, wv, bv = pop(6)
    q, k, v_ = h @ wq + bq, h @ wk + bk, h @ wv + bv
    scores = jnp.sum(q * k, axis=-1, keepdims=True) / math.sqrt(ATT_DIM)
    attn = jax.nn.softmax(scores, axis=-1) * v_   # softmax over size-1 axis == 1.0
    wo, bo = pop(2)
    return jax.nn.sigmoid(attn @ wo + bo)


if __name__ == "__main__":
    key = jax.random.PRNGKey(0)
    kx, kp = jax.random.split(key)

    params = init_params(kp)
    prepared = prepare_params(params)           # one-time host-side prep (hoisted)
    fwd = jax.jit(mlp_att_forward)

    # B=8: single-tile path; B=19: non-multiple-of-8 batch -> padding + 2-step grid.
    for B in (8, 19):
        x = jax.random.normal(jax.random.fold_in(kx, B), (B, IN_FEATURES), jnp.float32)
        out = jax.block_until_ready(fwd(x, prepared))
        ref = reference_forward(x, params)
        assert out.shape == (B, 1)
        # bf16 weight storage -> relaxed tolerance vs the f32 reference.
        assert jnp.allclose(out, ref, rtol=2e-2, atol=2e-2), f"mismatch (B={B})"

    print("KERNEL_OK")
</pallas_src>

<mosaic_0001>
module attributes {stable_mosaic.version = 11 : i64} {
  func.func @mlp_att_kernel(%arg0: i32, %arg1: memref<8x880xf32, #tpu.memory_space<vmem>>, %arg2: memref<880x512xbf16, #tpu.memory_space<vmem>>, %arg3: memref<512x256xbf16, #tpu.memory_space<vmem>>, %arg4: memref<256x128xbf16, #tpu.memory_space<vmem>>, %arg5: memref<128x64xbf16, #tpu.memory_space<vmem>>, %arg6: memref<64x1xbf16, #tpu.memory_space<vmem>>, %arg7: memref<1x1152xf32, #tpu.memory_space<vmem>>, %arg8: memref<8x1xf32, #tpu.memory_space<vmem>>) attributes {dimension_semantics = [#tpu.dimension_semantics<parallel>], iteration_bounds = array<i64: 1>, scalar_prefetch = 0 : i64, scratch_operands = 0 : i64, tpu.core_type = #tpu.core_type<tc>, window_params = [{transform_indices = @transform_0, window_bounds = array<i64: 8, 880>}, {pipeline_mode = #tpu.pipeline_mode<synchronous>, transform_indices = @transform_1, window_bounds = array<i64: 880, 512>}, {pipeline_mode = #tpu.pipeline_mode<synchronous>, transform_indices = @transform_2, window_bounds = array<i64: 512, 256>}, {pipeline_mode = #tpu.pipeline_mode<synchronous>, transform_indices = @transform_3, window_bounds = array<i64: 256, 128>}, {pipeline_mode = #tpu.pipeline_mode<synchronous>, transform_indices = @transform_4, window_bounds = array<i64: 128, 64>}, {pipeline_mode = #tpu.pipeline_mode<synchronous>, transform_indices = @transform_5, window_bounds = array<i64: 64, 1>}, {pipeline_mode = #tpu.pipeline_mode<synchronous>, transform_indices = @transform_6, window_bounds = array<i64: 1, 1152>}, {transform_indices = @transform_7, window_bounds = array<i64: 8, 1>}]} {
    %c0 = arith.constant 0 : index
    %c0_0 = arith.constant 0 : index
    %0 = vector.load %arg1[%c0, %c0_0] : memref<8x880xf32, #tpu.memory_space<vmem>>, vector<8x880xf32>
    %1 = arith.truncf %0 : vector<8x880xf32> to vector<8x880xbf16>
    %c0_1 = arith.constant 0 : index
    %c0_2 = arith.constant 0 : index
    %2 = vector.load %arg2[%c0_1, %c0_2] : memref<880x512xbf16, #tpu.memory_space<vmem>>, vector<880x512xbf16>
    %cst = arith.constant dense<0.000000e+00> : vector<8x512xf32>
    %3 = tpu.matmul %1, %2, %cst {dimension_numbers = #tpu.dot_dimension_numbers<[1], [0], [0], [1], [0, 0, 1, 1], [], []>} : vector<8x880xbf16>, vector<880x512xbf16>, vector<8x512xf32> -> vector<8x512xf32>
    %c0_3 = arith.constant 0 : index
    %c0_4 = arith.constant 0 : index
    %4 = vector.load %arg7[%c0_3, %c0_4] : memref<1x1152xf32, #tpu.memory_space<vmem>>, vector<1x512xf32>
    %5 = vector.broadcast %4 : vector<1x512xf32> to vector<8x512xf32>
    %6 = arith.addf %3, %5 : vector<8x512xf32>
    %cst_5 = arith.constant 0.000000e+00 : f32
    %7 = vector.broadcast %cst_5 : f32 to vector<8x512xf32>
    %8 = arith.maximumf %6, %7 : vector<8x512xf32>
    %9 = arith.truncf %8 : vector<8x512xf32> to vector<8x512xbf16>
    %c0_6 = arith.constant 0 : index
    %c0_7 = arith.constant 0 : index
    %10 = vector.load %arg3[%c0_6, %c0_7] : memref<512x256xbf16, #tpu.memory_space<vmem>>, vector<512x256xbf16>
    %cst_8 = arith.constant dense<0.000000e+00> : vector<8x256xf32>
    %11 = tpu.matmul %9, %10, %cst_8 {dimension_numbers = #tpu.dot_dimension_numbers<[1], [0], [0], [1], [0, 0, 1, 1], [], []>} : vector<8x512xbf16>, vector<512x256xbf16>, vector<8x256xf32> -> vector<8x256xf32>
    %c0_9 = arith.constant 0 : index
    %c512 = arith.constant 512 : index
    %12 = vector.load %arg7[%c0_9, %c512] : memref<1x1152xf32, #tpu.memory_space<vmem>>, vector<1x256xf32>
    %13 = vector.broadcast %12 : vector<1x256xf32> to vector<8x256xf32>
    %14 = arith.addf %11, %13 : vector<8x256xf32>
    %cst_10 = arith.constant 0.000000e+00 : f32
    %15 = vector.broadcast %cst_10 : f32 to vector<8x256xf32>
    %16 = arith.maximumf %14, %15 : vector<8x256xf32>
    %17 = arith.truncf %16 : vector<8x256xf32> to vector<8x256xbf16>
    %c0_11 = arith.constant 0 : index
    %c0_12 = arith.constant 0 : index
    %18 = vector.load %arg4[%c0_11, %c0_12] : memref<256x128xbf16, #tpu.memory_space<vmem>>, vector<256x128xbf16>
    %cst_13 = arith.constant dense<0.000000e+00> : vector<8x128xf32>
    %19 = tpu.matmul %17, %18, %cst_13 {dimension_numbers = #tpu.dot_dimension_numbers<[1], [0], [0], [1], [0, 0, 1, 1], [], []>} : vector<8x256xbf16>, vector<256x128xbf16>, vector<8x128xf32> -> vector<8x128xf32>
    %c0_14 = arith.constant 0 : index
    %c768 = arith.constant 768 : index
    %20 = vector.load %arg7[%c0_14, %c768] : memref<1x1152xf32, #tpu.memory_space<vmem>>, vector<1x128xf32>
    %21 = vector.broadcast %20 : vector<1x128xf32> to vector<8x128xf32>
    %22 = arith.addf %19, %21 : vector<8x128xf32>
    %cst_15 = arith.constant 0.000000e+00 : f32
    %23 = vector.broadcast %cst_15 : f32 to vector<8x128xf32>
    %24 = arith.maximumf %22, %23 : vector<8x128xf32>
    %25 = arith.truncf %24 : vector<8x128xf32> to vector<8x128xbf16>
    %c0_16 = arith.constant 0 : index
    %c0_17 = arith.constant 0 : index
    %26 = vector.load %arg5[%c0_16, %c0_17] : memref<128x64xbf16, #tpu.memory_space<vmem>>, vector<128x64xbf16>
    %cst_18 = arith.constant dense<0.000000e+00> : vector<8x64xf32>
    %27 = tpu.matmul %25, %26, %cst_18 {dimension_numbers = #tpu.dot_dimension_numbers<[1], [0], [0], [1], [0, 0, 1, 1], [], []>} : vector<8x128xbf16>, vector<128x64xbf16>, vector<8x64xf32> -> vector<8x64xf32>
    %c0_19 = arith.constant 0 : index
    %c896 = arith.constant 896 : index
    %28 = vector.load %arg7[%c0_19, %c896] : memref<1x1152xf32, #tpu.memory_space<vmem>>, vector<1x64xf32>
    %29 = vector.broadcast %28 : vector<1x64xf32> to vector<8x64xf32>
    %30 = arith.addf %27, %29 : vector<8x64xf32>
    %cst_20 = arith.constant 0.000000e+00 : f32
    %31 = vector.broadcast %cst_20 : f32 to vector<8x64xf32>
    %32 = arith.maximumf %30, %31 : vector<8x64xf32>
    %33 = arith.truncf %32 : vector<8x64xf32> to vector<8x64xbf16>
    %c0_21 = arith.constant 0 : index
    %c0_22 = arith.constant 0 : index
    %34 = vector.load %arg6[%c0_21, %c0_22] : memref<64x1xbf16, #tpu.memory_space<vmem>>, vector<64x1xbf16>
    %cst_23 = arith.constant dense<0.000000e+00> : vector<8x1xf32>
    %35 = tpu.matmul %33, %34, %cst_23 {dimension_numbers = #tpu.dot_dimension_numbers<[1], [0], [0], [1], [0, 0, 1, 1], [], []>} : vector<8x64xbf16>, vector<64x1xbf16>, vector<8x1xf32> -> vector<8x1xf32>
    %c0_24 = arith.constant 0 : index
    %c1024 = arith.constant 1024 : index
    %36 = vector.load %arg7[%c0_24, %c1024] : memref<1x1152xf32, #tpu.memory_space<vmem>>, vector<1x1xf32>
    %37 = vector.broadcast %36 : vector<1x1xf32> to vector<8x1xf32>
    %38 = arith.addf %35, %37 : vector<8x1xf32>
    %39 = arith.negf %38 : vector<8x1xf32>
    %40 = math.exp %39 : vector<8x1xf32>
    %cst_25 = arith.constant 1.000000e+00 : f32
    %41 = vector.broadcast %cst_25 : f32 to vector<8x1xf32>
    %42 = arith.addf %41, %40 : vector<8x1xf32>
    %43 = arith.divf %41, %42 : vector<8x1xf32>
    %c0_26 = arith.constant 0 : index
    %c0_27 = arith.constant 0 : index
    %44 = vector.load %arg8[%c0_26, %c0_27] : memref<8x1xf32, #tpu.memory_space<vmem>>, vector<8x1xf32>
    tpu.vector_store %arg8[%c0_26, %c0_27], %43 {strides = array<i32>} : memref<8x1xf32, #tpu.memory_space<vmem>>, vector<8x1xf32>,
    return
  }
  func.func @transform_0(%arg0: i32) -> (i32, i32) {
    %c0_i32 = arith.constant 0 : i32
    %c0_i32_0 = arith.constant 0 : i32
    return %arg0, %c0_i32 : i32, i32
  }
  func.func @transform_1(%arg0: i32) -> (i32, i32) {
    %c0_i32 = arith.constant 0 : i32
    %c0_i32_0 = arith.constant 0 : i32
    %c0_i32_1 = arith.constant 0 : i32
    return %c0_i32, %c0_i32_0 : i32, i32
  }
  func.func @transform_2(%arg0: i32) -> (i32, i32) {
    %c0_i32 = arith.constant 0 : i32
    %c0_i32_0 = arith.constant 0 : i32
    %c0_i32_1 = arith.constant 0 : i32
    return %c0_i32, %c0_i32_0 : i32, i32
  }
  func.func @transform_3(%arg0: i32) -> (i32, i32) {
    %c0_i32 = arith.constant 0 : i32
    %c0_i32_0 = arith.constant 0 : i32
    %c0_i32_1 = arith.constant 0 : i32
    return %c0_i32, %c0_i32_0 : i32, i32
  }
  func.func @transform_4(%arg0: i32) -> (i32, i32) {
    %c0_i32 = arith.constant 0 : i32
    %c0_i32_0 = arith.constant 0 : i32
    %c0_i32_1 = arith.constant 0 : i32
    return %c0_i32, %c0_i32_0 : i32, i32
  }
  func.func @transform_5(%arg0: i32) -> (i32, i32) {
    %c0_i32 = arith.constant 0 : i32
    %c0_i32_0 = arith.constant 0 : i32
    %c0_i32_1 = arith.constant 0 : i32
    return %c0_i32, %c0_i32_0 : i32, i32
  }
  func.func @transform_6(%arg0: i32) -> (i32, i32) {
    %c0_i32 = arith.constant 0 : i32
    %c0_i32_0 = arith.constant 0 : i32
    %c0_i32_1 = arith.constant 0 : i32
    return %c0_i32, %c0_i32_0 : i32, i32
  }
  func.func @transform_7(%arg0: i32) -> (i32, i32) {
    %c0_i32 = arith.constant 0 : i32
    %c0_i32_0 = arith.constant 0 : i32
    return %arg0, %c0_i32 : i32, i32
  }
}

</mosaic_0001>

<llo_original>
// kernel: mlp_att_forward.1
$region0: #{mlp_att_forward.1}
  #allocation0 [shape = 'u32[]', space=smem, size = 0x4, offset = 0x4, fixed_abs, tag = 'smem constant byte address 0x4 - core index']
  #allocation1 [shape = 'u32[72,128]{1,0:T(1,128)}', space=vmem, size = 0x9000, scoped, tag = 'internal scratch']
  %s0 = inlined_call_operand.hbm [shape: f32[8,880], index: 0, kind: input, shape index: {}]
  %s1 = inlined_call_operand.hbm [shape: bf16[880,512], index: 1, kind: input, shape index: {}]
  %s2 = inlined_call_operand.hbm [shape: bf16[512,256], index: 2, kind: input, shape index: {}]
  %s3 = inlined_call_operand.vmem [shape: bf16[256,128], index: 3, kind: input, shape index: {}]
  %s4 = inlined_call_operand.vmem [shape: bf16[128,64], index: 4, kind: input, shape index: {}]
  %s5 = inlined_call_operand.vmem [shape: bf16[64,1], index: 5, kind: input, shape index: {}]
  %s6 = inlined_call_operand.hbm [shape: f32[1,1152], index: 6, kind: input, shape index: {}]
  %s7 = inlined_call_operand.vmem [shape: f32[8,1], index: 7, kind: output, shape index: {}]
  %s8 = sld [smem:[#allocation0]]
  $region54: #{mlp_att_forward.1} parent=0
    _
  %s10 = ssub.s32 1, %s8
  %s11 = scalar_select 0, %s10, %s8
  $region1: #{mlp_att_forward.1} parent=0
    #allocation2 [shape = 'u8[28672]{0}', space=vmem, size = 0x7000, scoped, tag = 'input window, operand 0, single buffered']
    #allocation3 [shape = 's32[1]{0}', space=sflag, size = 0x4, scoped, tag = 'scoped memory for mlp_att_forward.1']
    #allocation4 [shape = 'u8[901120]{0}', space=vmem, size = 0xdc000, scoped, tag = 'input window, operand 1, single buffered']
    #allocation5 [shape = 's32[1]{0}', space=sflag, size = 0x4, scoped, tag = 'scoped memory for mlp_att_forward.1']
    #allocation6 [shape = 'u8[262144]{0}', space=vmem, size = 0x40000, scoped, tag = 'input window, operand 2, single buffered']
    #allocation7 [shape = 'u8[4608]{0}', space=vmem, size = 0x1400, scoped, tag = 'input window, operand 6, single buffered']
    #allocation8 [shape = 's32[1]{0}', space=sflag, size = 0x4, scoped, tag = 'scoped memory for mlp_att_forward.1']
    %12 = vsyncpa [#allocation3], 0
    %13 = vsyncpa [#allocation5], 0
    %14 = vsyncpa [#allocation8], 0
    // Predicated region
    $region2: #{mlp_att_forward.1} parent=1 // pred_check
      _
    $region3: #{mlp_att_forward.1} parent=1 // pred_check_branch
      %16 = sbr.rel (0) target = $region5
    $region4: #{mlp_att_forward.1} parent=1 // pred_region
      %18 = vsyncadd [#allocation3], 0
      %s20 = sshll.u32 %s0, 4
      %s21 = int_to_ptr.hbm [resolvable:$true] %s20
      %s22 = sshll.u32 [#allocation2], 4
      %s23 = int_to_ptr.vmem [resolvable:$true] %s22
      %25 = dma.hbm_to_vmem [thread:$0]  %s21, 896, %s23, [#allocation3]
    $region5: #{mlp_att_forward.1} parent=1 // pred_fallthru
      _
    // Predicated region
    $region6: #{mlp_att_forward.1} parent=1 // pred_check
      _
    $region7: #{mlp_att_forward.1} parent=1 // pred_check_branch
      %27 = sbr.rel (0) target = $region9
    $region8: #{mlp_att_forward.1} parent=1 // pred_region
      %29 = vsyncadd [#allocation5], 0
      %s30 = sshll.u32 %s1, 4
      %s31 = int_to_ptr.hbm [resolvable:$true] %s30
      %s32 = sshll.u32 [#allocation4], 4
      %s33 = int_to_ptr.vmem [resolvable:$true] %s32
      %38 = dma.hbm_to_vmem [thread:$0]  %s31, 28160, %s33, [#allocation5], 256, 256, 16
    $region9: #{mlp_att_forward.1} parent=1 // pred_fallthru
      _
    // Predicated region
    $region10: #{mlp_att_forward.1} parent=1 // pred_check
      _
    $region11: #{mlp_att_forward.1} parent=1 // pred_check_branch
      %40 = sbr.rel (0) target = $region13
    $region12: #{mlp_att_forward.1} parent=1 // pred_region
      %42 = vsyncadd [#allocation5], 0
      %s43 = sshll.u32 %s2, 4
      %s44 = int_to_ptr.hbm [resolvable:$true] %s43
      %s45 = sshll.u32 [#allocation6], 4
      %s46 = int_to_ptr.vmem [resolvable:$true] %s45
      %51 = dma.hbm_to_vmem [thread:$0]  %s44, 8192, %s46, [#allocation5], 128, 128, 8
    $region13: #{mlp_att_forward.1} parent=1 // pred_fallthru
      _
    // Predicated region
    $region14: #{mlp_att_forward.1} parent=1 // pred_check
      _
    $region15: #{mlp_att_forward.1} parent=1 // pred_check_branch
      %53 = sbr.rel (0) target = $region17
    $region16: #{mlp_att_forward.1} parent=1 // pred_region
      _
    $region17: #{mlp_att_forward.1} parent=1 // pred_fallthru
      _
    // Predicated region
    $region18: #{mlp_att_forward.1} parent=1 // pred_check
      _
    $region19: #{mlp_att_forward.1} parent=1 // pred_check_branch
      %55 = sbr.rel (0) target = $region21
    $region20: #{mlp_att_forward.1} parent=1 // pred_region
      _
    $region21: #{mlp_att_forward.1} parent=1 // pred_fallthru
      _
    // Predicated region
    $region22: #{mlp_att_forward.1} parent=1 // pred_check
      _
    $region23: #{mlp_att_forward.1} parent=1 // pred_check_branch
      %57 = sbr.rel (0) target = $region25
    $region24: #{mlp_att_forward.1} parent=1 // pred_region
      _
    $region25: #{mlp_att_forward.1} parent=1 // pred_fallthru
      _
    // Predicated region
    $region26: #{mlp_att_forward.1} parent=1 // pred_check
      _
    $region27: #{mlp_att_forward.1} parent=1 // pred_check_branch
      %59 = sbr.rel (0) target = $region29
    $region28: #{mlp_att_forward.1} parent=1 // pred_region
      %61 = vsyncadd [#allocation8], 0
      %s63 = sshll.u32 %s6, 4
      %s64 = int_to_ptr.hbm [resolvable:$true] %s63
      %s65 = sshll.u32 [#allocation7], 4
      %s66 = int_to_ptr.vmem [resolvable:$true] %s65
      %68 = dma.hbm_to_vmem [thread:$0]  %s64, 144, %s66, [#allocation8]
    $region29: #{mlp_att_forward.1} parent=1 // pred_fallthru
      _
    // Predicated region
    $region30: #{mlp_att_forward.1} parent=1 // pred_check
      _
    $region31: #{mlp_att_forward.1} parent=1 // pred_check_branch
      %70 = sbr.rel (0) target = $region33
    $region32: #{mlp_att_forward.1} parent=1 // pred_region
      %72 = dma.done [#allocation3], 896
    $region33: #{mlp_att_forward.1} parent=1 // pred_fallthru
      _
    // Predicated region
    $region34: #{mlp_att_forward.1} parent=1 // pred_check
      _
    $region35: #{mlp_att_forward.1} parent=1 // pred_check_branch
      %74 = sbr.rel (0) target = $region37
    $region36: #{mlp_att_forward.1} parent=1 // pred_region
      %76 = dma.done [#allocation5], 28160
    $region37: #{mlp_att_forward.1} parent=1 // pred_fallthru
      _
    // Predicated region
    $region38: #{mlp_att_forward.1} parent=1 // pred_check
      _
    $region39: #{mlp_att_forward.1} parent=1 // pred_check_branch
      %78 = sbr.rel (0) target = $region41
    $region40: #{mlp_att_forward.1} parent=1 // pred_region
      %80 = dma.done [#allocation5], 8192
    $region41: #{mlp_att_forward.1} parent=1 // pred_fallthru
      _
    // Predicated region
    $region42: #{mlp_att_forward.1} parent=1 // pred_check
      _
    $region43: #{mlp_att_forward.1} parent=1 // pred_check_branch
      %82 = sbr.rel (0) target = $region45
    $region44: #{mlp_att_forward.1} parent=1 // pred_region
      %84 = dma.done [#allocation8], 144
    $region45: #{mlp_att_forward.1} parent=1 // pred_fallthru
      _
    %v86 = vld [vmem:[#allocation2] sm:$0xff]
    %v87 = vld [vmem:[#allocation2 + $0x8] sm:$0xff]
    %v88 = vld [vmem:[#allocation2 + $0x10] sm:$0xff]
    %v89 = vld [vmem:[#allocation2 + $0x18] sm:$0xff]
    %v90 = vld [vmem:[#allocation2 + $0x20] sm:$0xff]
    %v91 = vld [vmem:[#allocation2 + $0x28] sm:$0xff]
    %v92 = vld [vmem:[#allocation2 + $0x30] sm:$0xff]
    %v93 = vpack.c.bf16 %v86, %v86
    %v94 = vpack.c.bf16 %v87, %v87
    %v95 = vpack.c.bf16 %v88, %v88
    %v96 = vpack.c.bf16 %v89, %v89
    %v97 = vpack.c.bf16 %v90, %v90
    %v98 = vpack.c.bf16 %v91, %v91
    %v99 = vpack.c.bf16 %v92, %v92
    %v100 = vld [vmem:[#allocation4] sm:$0xff]
    %v101 = vld [vmem:[#allocation4 + $0x8] sm:$0xff]
    %v102 = vld [vmem:[#allocation4 + $0x10] sm:$0xff]
    %v103 = vld [vmem:[#allocation4 + $0x18] sm:$0xff]
    %v104 = vld [vmem:[#allocation4 + $0x20] sm:$0xff]
    %v105 = vld [vmem:[#allocation4 + $0x28] sm:$0xff]
    %v106 = vld [vmem:[#allocation4 + $0x30] sm:$0xff]
    %v107 = vld [vmem:[#allocation4 + $0x38] sm:$0xff]
    %v108 = vld [vmem:[#allocation4 + $0x40] sm:$0xff]
    %v109 = vld [vmem:[#allocation4 + $0x48] sm:$0xff]
    %v110 = vld [vmem:[#allocation4 + $0x50] sm:$0xff]
    %v111 = vld [vmem:[#allocation4 + $0x58] sm:$0xff]
    %v112 = vld [vmem:[#allocation4 + $0x60] sm:$0xff]
    %v113 = vld [vmem:[#allocation4 + $0x68] sm:$0xff]
    %v114 = vld [vmem:[#allocation4 + $0x70] sm:$0xff]
    %v115 = vld [vmem:[#allocation4 + $0x78] sm:$0xff]
    %v116 = vld [vmem:[#allocation4 + $0x80] sm:$0xff]
    %v117 = vld [vmem:[#allocation4 + $0x88] sm:$0xff]
    %v118 = vld [vmem:[#allocation4 + $0x90] sm:$0xff]
    %v119 = vld [vmem:[#allocation4 + $0x98] sm:$0xff]
    %v120 = vld [vmem:[#allocation4 + $0xa0] sm:$0xff]
    %v121 = vld [vmem:[#allocation4 + $0xa8] sm:$0xff]
    %v122 = vld [vmem:[#allocation4 + $0xb0] sm:$0xff]
    %v123 = vld [vmem:[#allocation4 + $0xb8] sm:$0xff]
    %v124 = vld [vmem:[#allocation4 + $0xc0] sm:$0xff]
    %v125 = vld [vmem:[#allocation4 + $0xc8] sm:$0xff]
    %v126 = vld [vmem:[#allocation4 + $0xd0] sm:$0xff]
    %v127 = vld [vmem:[#allocation4 + $0xd8] sm:$0xff]
    %v128 = vld [vmem:[#allocation4 + $0xe0] sm:$0xff]
    %v129 = vld [vmem:[#allocation4 + $0xe8] sm:$0xff]
    %v130 = vld [vmem:[#allocation4 + $0xf0] sm:$0xff]
    %v131 = vld [vmem:[#allocation4 + $0xf8] sm:$0xff]
    %v132 = vld [vmem:[#allocation4 + $0x100] sm:$0xff]
    %v133 = vld [vmem:[#allocation4 + $0x108] sm:$0xff]
    %v134 = vld [vmem:[#allocation4 + $0x110] sm:$0xff]
    %v135 = vld [vmem:[#allocation4 + $0x118] sm:$0xff]
    %v136 = vld [vmem:[#allocation4 + $0x120] sm:$0xff]
    %v137 = vld [vmem:[#allocation4 + $0x128] sm:$0xff]
    %v138 = vld [vmem:[#allocation4 + $0x130] sm:$0xff]
    %v139 = vld [vmem:[#allocation4 + $0x138] sm:$0xff]
    %v140 = vld [vmem:[#allocation4 + $0x140] sm:$0xff]
    %v141 = vld [vmem:[#allocation4 + $0x148] sm:$0xff]
    %v142 = vld [vmem:[#allocation4 + $0x150] sm:$0xff]
    %v143 = vld [vmem:[#allocation4 + $0x158] sm:$0xff]
    %v144 = vld [vmem:[#allocation4 + $0x160] sm:$0xff]
    %v145 = vld [vmem:[#allocation4 + $0x168] sm:$0xff]
    %v146 = vld [vmem:[#allocation4 + $0x170] sm:$0xff]
    %v147 = vld [vmem:[#allocation4 + $0x178] sm:$0xff]
    %v148 = vld [vmem:[#allocation4 + $0x180] sm:$0xff]
    %v149 = vld [vmem:[#allocation4 + $0x188] sm:$0xff]
    %v150 = vld [vmem:[#allocation4 + $0x190] sm:$0xff]
    %v151 = vld [vmem:[#allocation4 + $0x198] sm:$0xff]
    %v152 = vld [vmem:[#allocation4 + $0x1a0] sm:$0xff]
    %v153 = vld [vmem:[#allocation4 + $0x1a8] sm:$0xff]
    %v154 = vld [vmem:[#allocation4 + $0x1b0] sm:$0xff]
    %v155 = vld [vmem:[#allocation4 + $0x1b8] sm:$0xff]
    %v156 = vld [vmem:[#allocation4 + $0x1c0] sm:$0xff]
    %v157 = vld [vmem:[#allocation4 + $0x1c8] sm:$0xff]
    %v158 = vld [vmem:[#allocation4 + $0x1d0] sm:$0xff]
    %v159 = vld [vmem:[#allocation4 + $0x1d8] sm:$0xff]
    %v160 = vld [vmem:[#allocation4 + $0x1e0] sm:$0xff]
    %v161 = vld [vmem:[#allocation4 + $0x1e8] sm:$0xff]
    %v162 = vld [vmem:[#allocation4 + $0x1f0] sm:$0xff]
    %v163 = vld [vmem:[#allocation4 + $0x1f8] sm:$0xff]
    %v164 = vld [vmem:[#allocation4 + $0x200] sm:$0xff]
    %v165 = vld [vmem:[#allocation4 + $0x208] sm:$0xff]
    %v166 = vld [vmem:[#allocation4 + $0x210] sm:$0xff]
    %v167 = vld [vmem:[#allocation4 + $0x218] sm:$0xff]
    %v168 = vld [vmem:[#allocation4 + $0x220] sm:$0xff]
    %v169 = vld [vmem:[#allocation4 + $0x228] sm:$0xff]
    %v170 = vld [vmem:[#allocation4 + $0x230] sm:$0xff]
    %v171 = vld [vmem:[#allocation4 + $0x238] sm:$0xff]
    %v172 = vld [vmem:[#allocation4 + $0x240] sm:$0xff]
    %v173 = vld [vmem:[#allocation4 + $0x248] sm:$0xff]
    %v174 = vld [vmem:[#allocation4 + $0x250] sm:$0xff]
    %v175 = vld [vmem:[#allocation4 + $0x258] sm:$0xff]
    %v176 = vld [vmem:[#allocation4 + $0x260] sm:$0xff]
    %v177 = vld [vmem:[#allocation4 + $0x268] sm:$0xff]
    %v178 = vld [vmem:[#allocation4 + $0x270] sm:$0xff]
    %v179 = vld [vmem:[#allocation4 + $0x278] sm:$0xff]
    %v180 = vld [vmem:[#allocation4 + $0x280] sm:$0xff]
    %v181 = vld [vmem:[#allocation4 + $0x288] sm:$0xff]
    %v182 = vld [vmem:[#allocation4 + $0x290] sm:$0xff]
    %v183 = vld [vmem:[#allocation4 + $0x298] sm:$0xff]
    %v184 = vld [vmem:[#allocation4 + $0x2a0] sm:$0xff]
    %v185 = vld [vmem:[#allocation4 + $0x2a8] sm:$0xff]
    %v186 = vld [vmem:[#allocation4 + $0x2b0] sm:$0xff]
    %v187 = vld [vmem:[#allocation4 + $0x2b8] sm:$0xff]
    %v188 = vld [vmem:[#allocation4 + $0x2c0] sm:$0xff]
    %v189 = vld [vmem:[#allocation4 + $0x2c8] sm:$0xff]
    %v190 = vld [vmem:[#allocation4 + $0x2d0] sm:$0xff]
    %v191 = vld [vmem:[#allocation4 + $0x2d8] sm:$0xff]
    %v192 = vld [vmem:[#allocation4 + $0x2e0] sm:$0xff]
    %v193 = vld [vmem:[#allocation4 + $0x2e8] sm:$0xff]
    %v194 = vld [vmem:[#allocation4 + $0x2f0] sm:$0xff]
    %v195 = vld [vmem:[#allocation4 + $0x2f8] sm:$0xff]
    %v196 = vld [vmem:[#allocation4 + $0x300] sm:$0xff]
    %v197 = vld [vmem:[#allocation4 + $0x308] sm:$0xff]
    %v198 = vld [vmem:[#allocation4 + $0x310] sm:$0xff]
    %v199 = vld [vmem:[#allocation4 + $0x318] sm:$0xff]
    %v200 = vld [vmem:[#allocation4 + $0x320] sm:$0xff]
    %v201 = vld [vmem:[#allocation4 + $0x328] sm:$0xff]
    %v202 = vld [vmem:[#allocation4 + $0x330] sm:$0xff]
    %v203 = vld [vmem:[#allocation4 + $0x338] sm:$0xff]
    %v204 = vld [vmem:[#allocation4 + $0x340] sm:$0xff]
    %v205 = vld [vmem:[#allocation4 + $0x348] sm:$0xff]
    %v206 = vld [vmem:[#allocation4 + $0x350] sm:$0xff]
    %v207 = vld [vmem:[#allocation4 + $0x358] sm:$0xff]
    %v208 = vld [vmem:[#allocation4 + $0x360] sm:$0xff]
    %v209 = vld [vmem:[#allocation4 + $0x368] sm:$0xff]
    %v210 = vld [vmem:[#allocation4 + $0x370] sm:$0xff]
    %v211 = vld [vmem:[#allocation4 + $0x378] sm:$0xff]
    %v212 = vld [vmem:[#allocation4 + $0x380] sm:$0xff]
    %v213 = vld [vmem:[#allocation4 + $0x388] sm:$0xff]
    %v214 = vld [vmem:[#allocation4 + $0x390] sm:$0xff]
    %v215 = vld [vmem:[#allocation4 + $0x398] sm:$0xff]
    %v216 = vld [vmem:[#allocation4 + $0x3a0] sm:$0xff]
    %v217 = vld [vmem:[#allocation4 + $0x3a8] sm:$0xff]
    %v218 = vld [vmem:[#allocation4 + $0x3b0] sm:$0xff]
    %v219 = vld [vmem:[#allocation4 + $0x3b8] sm:$0xff]
    %v220 = vld [vmem:[#allocation4 + $0x3c0] sm:$0xff]
    %v221 = vld [vmem:[#allocation4 + $0x3c8] sm:$0xff]
    %v222 = vld [vmem:[#allocation4 + $0x3d0] sm:$0xff]
    %v223 = vld [vmem:[#allocation4 + $0x3d8] sm:$0xff]
    %v224 = vld [vmem:[#allocation4 + $0x3e0] sm:$0xff]
    %v225 = vld [vmem:[#allocation4 + $0x3e8] sm:$0xff]
    %v226 = vld [vmem:[#allocation4 + $0x3f0] sm:$0xff]
    %v227 = vld [vmem:[#allocation4 + $0x3f8] sm:$0xff]
    %v228 = vld [vmem:[#allocation4 + $0x400] sm:$0xff]
    %v229 = vld [vmem:[#allocation4 + $0x408] sm:$0xff]
    %v230 = vld [vmem:[#allocation4 + $0x410] sm:$0xff]
    %v231 = vld [vmem:[#allocation4 + $0x418] sm:$0xff]
    %v232 = vld [vmem:[#allocation4 + $0x420] sm:$0xff]
    %v233 = vld [vmem:[#allocation4 + $0x428] sm:$0xff]
    %v234 = vld [vmem:[#allocation4 + $0x430] sm:$0xff]
    %v235 = vld [vmem:[#allocation4 + $0x438] sm:$0xff]
    %v236 = vld [vmem:[#allocation4 + $0x440] sm:$0xff]
    %v237 = vld [vmem:[#allocation4 + $0x448] sm:$0xff]
    %v238 = vld [vmem:[#allocation4 + $0x450] sm:$0xff]
    %v239 = vld [vmem:[#allocation4 + $0x458] sm:$0xff]
    %v240 = vld [vmem:[#allocation4 + $0x460] sm:$0xff]
    %v241 = vld [vmem:[#allocation4 + $0x468] sm:$0xff]
    %v242 = vld [vmem:[#allocation4 + $0x470] sm:$0xff]
    %v243 = vld [vmem:[#allocation4 + $0x478] sm:$0xff]
    %v244 = vld [vmem:[#allocation4 + $0x480] sm:$0xff]
    %v245 = vld [vmem:[#allocation4 + $0x488] sm:$0xff]
    %v246 = vld [vmem:[#allocation4 + $0x490] sm:$0xff]
    %v247 = vld [vmem:[#allocation4 + $0x498] sm:$0xff]
    %v248 = vld [vmem:[#allocation4 + $0x4a0] sm:$0xff]
    %v249 = vld [vmem:[#allocation4 + $0x4a8] sm:$0xff]
    %v250 = vld [vmem:[#allocation4 + $0x4b0] sm:$0xff]
    %v251 = vld [vmem:[#allocation4 + $0x4b8] sm:$0xff]
    %v252 = vld [vmem:[#allocation4 + $0x4c0] sm:$0xff]
    %v253 = vld [vmem:[#allocation4 + $0x4c8] sm:$0xff]
    %v254 = vld [vmem:[#allocation4 + $0x4d0] sm:$0xff]
    %v255 = vld [vmem:[#allocation4 + $0x4d8] sm:$0xff]
    %v256 = vld [vmem:[#allocation4 + $0x4e0] sm:$0xff]
    %v257 = vld [vmem:[#allocation4 + $0x4e8] sm:$0xff]
    %v258 = vld [vmem:[#allocation4 + $0x4f0] sm:$0xff]
    %v259 = vld [vmem:[#allocation4 + $0x4f8] sm:$0xff]
    %v260 = vld [vmem:[#allocation4 + $0x500] sm:$0xff]
    %v261 = vld [vmem:[#allocation4 + $0x508] sm:$0xff]
    %v262 = vld [vmem:[#allocation4 + $0x510] sm:$0xff]
    %v263 = vld [vmem:[#allocation4 + $0x518] sm:$0xff]
    %v264 = vld [vmem:[#allocation4 + $0x520] sm:$0xff]
    %v265 = vld [vmem:[#allocation4 + $0x528] sm:$0xff]
    %v266 = vld [vmem:[#allocation4 + $0x530] sm:$0xff]
    %v267 = vld [vmem:[#allocation4 + $0x538] sm:$0xff]
    %v268 = vld [vmem:[#allocation4 + $0x540] sm:$0xff]
    %v269 = vld [vmem:[#allocation4 + $0x548] sm:$0xff]
    %v270 = vld [vmem:[#allocation4 + $0x550] sm:$0xff]
    %v271 = vld [vmem:[#allocation4 + $0x558] sm:$0xff]
    %v272 = vld [vmem:[#allocation4 + $0x560] sm:$0xff]
    %v273 = vld [vmem:[#allocation4 + $0x568] sm:$0xff]
    %v274 = vld [vmem:[#allocation4 + $0x570] sm:$0xff]
    %v275 = vld [vmem:[#allocation4 + $0x578] sm:$0xff]
    %v276 = vld [vmem:[#allocation4 + $0x580] sm:$0xff]
    %v277 = vld [vmem:[#allocation4 + $0x588] sm:$0xff]
    %v278 = vld [vmem:[#allocation4 + $0x590] sm:$0xff]
    %v279 = vld [vmem:[#allocation4 + $0x598] sm:$0xff]
    %v280 = vld [vmem:[#allocation4 + $0x5a0] sm:$0xff]
    %v281 = vld [vmem:[#allocation4 + $0x5a8] sm:$0xff]
    %v282 = vld [vmem:[#allocation4 + $0x5b0] sm:$0xff]
    %v283 = vld [vmem:[#allocation4 + $0x5b8] sm:$0xff]
    %v284 = vld [vmem:[#allocation4 + $0x5c0] sm:$0xff]
    %v285 = vld [vmem:[#allocation4 + $0x5c8] sm:$0xff]
    %v286 = vld [vmem:[#allocation4 + $0x5d0] sm:$0xff]
    %v287 = vld [vmem:[#allocation4 + $0x5d8] sm:$0xff]
    %v288 = vld [vmem:[#allocation4 + $0x5e0] sm:$0xff]
    %v289 = vld [vmem:[#allocation4 + $0x5e8] sm:$0xff]
    %v290 = vld [vmem:[#allocation4 + $0x5f0] sm:$0xff]
    %v291 = vld [vmem:[#allocation4 + $0x5f8] sm:$0xff]
    %v292 = vld [vmem:[#allocation4 + $0x600] sm:$0xff]
    %v293 = vld [vmem:[#allocation4 + $0x608] sm:$0xff]
    %v294 = vld [vmem:[#allocation4 + $0x610] sm:$0xff]
    %v295 = vld [vmem:[#allocation4 + $0x618] sm:$0xff]
    %v296 = vld [vmem:[#allocation4 + $0x620] sm:$0xff]
    %v297 = vld [vmem:[#allocation4 + $0x628] sm:$0xff]
    %v298 = vld [vmem:[#allocation4 + $0x630] sm:$0xff]
    %v299 = vld [vmem:[#allocation4 + $0x638] sm:$0xff]
    %v300 = vld [vmem:[#allocation4 + $0x640] sm:$0xff]
    %v301 = vld [vmem:[#allocation4 + $0x648] sm:$0xff]
    %v302 = vld [vmem:[#allocation4 + $0x650] sm:$0xff]
    %v303 = vld [vmem:[#allocation4 + $0x658] sm:$0xff]
    %v304 = vld [vmem:[#allocation4 + $0x660] sm:$0xff]
    %v305 = vld [vmem:[#allocation4 + $0x668] sm:$0xff]
    %v306 = vld [vmem:[#allocation4 + $0x670] sm:$0xff]
    %v307 = vld [vmem:[#allocation4 + $0x678] sm:$0xff]
    %v308 = vld [vmem:[#allocation4 + $0x680] sm:$0xff]
    %v309 = vld [vmem:[#allocation4 + $0x688] sm:$0xff]
    %v310 = vld [vmem:[#allocation4 + $0x690] sm:$0xff]
    %v311 = vld [vmem:[#allocation4 + $0x698] sm:$0xff]
    %v312 = vld [vmem:[#allocation4 + $0x6a0] sm:$0xff]
    %v313 = vld [vmem:[#allocation4 + $0x6a8] sm:$0xff]
    %v314 = vld [vmem:[#allocation4 + $0x6b0] sm:$0xff]
    %v315 = vld [vmem:[#allocation4 + $0x6b8] sm:$0xff]
    %v316 = vld [vmem:[#allocation4 + $0x6c0] sm:$0xff]
    %v317 = vld [vmem:[#allocation4 + $0x6c8] sm:$0xff]
    %v318 = vld [vmem:[#allocation4 + $0x6d0] sm:$0xff]
    %v319 = vld [vmem:[#allocation4 + $0x6d8] sm:$0xff]
    %v320 = vld [vmem:[#allocation7] sm:$0xf]
    %v322 = vperm.slane %v320, 0
    %v323 = vperm.slane %v320, 1
    %v324 = vperm.slane %v320, 2
    %v325 = vperm.slane %v320, 3
    %v550 = vunpack.c.l.b16 %v100
    %v551 = vunpack.c.h.b16 %v100
    %v552 = vunpack.c.l.b16 %v101
    %v553 = vunpack.c.h.b16 %v101
    %v554 = vunpack.c.l.b16 %v102
    %v555 = vunpack.c.h.b16 %v102
    %v556 = vunpack.c.l.b16 %v103
    %v557 = vunpack.c.h.b16 %v103
    %v558 = vunpack.c.l.b16 %v104
    %v559 = vunpack.c.h.b16 %v104
    %v560 = vunpack.c.l.b16 %v105
    %v561 = vunpack.c.h.b16 %v105
    %v562 = vunpack.c.l.b16 %v106
    %v563 = vunpack.c.h.b16 %v106
    %v564 = vunpack.c.l.b16 %v107
    %v565 = vunpack.c.h.b16 %v107
    %v566 = vunpack.c.l.b16 %v108
    %v567 = vunpack.c.h.b16 %v108
    %v568 = vunpack.c.l.b16 %v109
    %v569 = vunpack.c.h.b16 %v109
    %v570 = vunpack.c.l.b16 %v110
    %v571 = vunpack.c.h.b16 %v110
    %v572 = vunpack.c.l.b16 %v111
    %v573 = vunpack.c.h.b16 %v111
    %v574 = vunpack.c.l.b16 %v112
    %v575 = vunpack.c.h.b16 %v112
    %v576 = vunpack.c.l.b16 %v113
    %v577 = vunpack.c.h.b16 %v113
    %v578 = vunpack.c.l.b16 %v114
    %v579 = vunpack.c.h.b16 %v114
    %v580 = vunpack.c.l.b16 %v115
    %v581 = vunpack.c.h.b16 %v115
    %v582 = vunpack.c.l.b16 %v116
    %v583 = vunpack.c.h.b16 %v116
    %v584 = vunpack.c.l.b16 %v117
    %v585 = vunpack.c.h.b16 %v117
    %v586 = vunpack.c.l.b16 %v118
    %v587 = vunpack.c.h.b16 %v118
    %v588 = vunpack.c.l.b16 %v119
    %v589 = vunpack.c.h.b16 %v119
    %v590 = vunpack.c.l.b16 %v120
    %v591 = vunpack.c.h.b16 %v120
    %v592 = vunpack.c.l.b16 %v121
    %v593 = vunpack.c.h.b16 %v121
    %v594 = vunpack.c.l.b16 %v122
    %v595 = vunpack.c.h.b16 %v122
    %v596 = vunpack.c.l.b16 %v123
    %v597 = vunpack.c.h.b16 %v123
    %v598 = vunpack.c.l.b16 %v124
    %v599 = vunpack.c.h.b16 %v124
    %v600 = vunpack.c.l.b16 %v125
    %v601 = vunpack.c.h.b16 %v125
    %v602 = vunpack.c.l.b16 %v126
    %v603 = vunpack.c.h.b16 %v126
    %v604 = vunpack.c.l.b16 %v127
    %v605 = vunpack.c.h.b16 %v127
    %v606 = vunpack.c.l.b16 %v128
    %v607 = vunpack.c.h.b16 %v128
    %v608 = vunpack.c.l.b16 %v129
    %v609 = vunpack.c.h.b16 %v129
    %v610 = vunpack.c.l.b16 %v130
    %v611 = vunpack.c.h.b16 %v130
    %v612 = vunpack.c.l.b16 %v131
    %v613 = vunpack.c.h.b16 %v131
    %v614 = vunpack.c.l.b16 %v132
    %v615 = vunpack.c.h.b16 %v132
    %v616 = vunpack.c.l.b16 %v133
    %v617 = vunpack.c.h.b16 %v133
    %v618 = vunpack.c.l.b16 %v134
    %v619 = vunpack.c.h.b16 %v134
    %v620 = vunpack.c.l.b16 %v135
    %v621 = vunpack.c.h.b16 %v135
    %v622 = vunpack.c.l.b16 %v136
    %v623 = vunpack.c.h.b16 %v136
    %v624 = vunpack.c.l.b16 %v137
    %v625 = vunpack.c.h.b16 %v137
    %v626 = vunpack.c.l.b16 %v138
    %v627 = vunpack.c.h.b16 %v138
    %v628 = vunpack.c.l.b16 %v139
    %v629 = vunpack.c.h.b16 %v139
    %v630 = vunpack.c.l.b16 %v140
    %v631 = vunpack.c.h.b16 %v140
    %v632 = vunpack.c.l.b16 %v141
    %v633 = vunpack.c.h.b16 %v141
    %v634 = vunpack.c.l.b16 %v142
    %v635 = vunpack.c.h.b16 %v142
    %v636 = vunpack.c.l.b16 %v143
    %v637 = vunpack.c.h.b16 %v143
    %v638 = vunpack.c.l.b16 %v144
    %v639 = vunpack.c.h.b16 %v144
    %v640 = vunpack.c.l.b16 %v145
    %v641 = vunpack.c.h.b16 %v145
    %v642 = vunpack.c.l.b16 %v146
    %v643 = vunpack.c.h.b16 %v146
    %v644 = vunpack.c.l.b16 %v147
    %v645 = vunpack.c.h.b16 %v147
    %v646 = vunpack.c.l.b16 %v148
    %v647 = vunpack.c.h.b16 %v148
    %v648 = vunpack.c.l.b16 %v149
    %v649 = vunpack.c.h.b16 %v149
    %v650 = vunpack.c.l.b16 %v150
    %v651 = vunpack.c.h.b16 %v150
    %v652 = vunpack.c.l.b16 %v151
    %v653 = vunpack.c.h.b16 %v151
    %v654 = vunpack.c.l.b16 %v152
    %v655 = vunpack.c.h.b16 %v152
    %v656 = vunpack.c.l.b16 %v153
    %v657 = vunpack.c.h.b16 %v153
    %v658 = vunpack.c.l.b16 %v154
    %v659 = vunpack.c.h.b16 %v154
    %v660 = vunpack.c.l.b16 %v155
    %v661 = vunpack.c.h.b16 %v155
    %v662 = vunpack.c.l.b16 %v156
    %v663 = vunpack.c.h.b16 %v156
    %v664 = vunpack.c.l.b16 %v157
    %v665 = vunpack.c.h.b16 %v157
    %v666 = vunpack.c.l.b16 %v158
    %v667 = vunpack.c.h.b16 %v158
    %v668 = vunpack.c.l.b16 %v159
    %v669 = vunpack.c.h.b16 %v159
    %v670 = vunpack.c.l.b16 %v160
    %v671 = vunpack.c.h.b16 %v160
    %v672 = vunpack.c.l.b16 %v161
    %v673 = vunpack.c.h.b16 %v161
    %v674 = vunpack.c.l.b16 %v162
    %v675 = vunpack.c.h.b16 %v162
    %v676 = vunpack.c.l.b16 %v163
    %v677 = vunpack.c.h.b16 %v163
    %v678 = vunpack.c.l.b16 %v164
    %v679 = vunpack.c.h.b16 %v164
    %v680 = vunpack.c.l.b16 %v165
    %v681 = vunpack.c.h.b16 %v165
    %v682 = vunpack.c.l.b16 %v166
    %v683 = vunpack.c.h.b16 %v166
    %v684 = vunpack.c.l.b16 %v167
    %v685 = vunpack.c.h.b16 %v167
    %v686 = vunpack.c.l.b16 %v168
    %v687 = vunpack.c.h.b16 %v168
    %v688 = vunpack.c.l.b16 %v169
    %v689 = vunpack.c.h.b16 %v169
    %v690 = vunpack.c.l.b16 %v170
    %v691 = vunpack.c.h.b16 %v170
    %v692 = vunpack.c.l.b16 %v171
    %v693 = vunpack.c.h.b16 %v171
    %v694 = vunpack.c.l.b16 %v172
    %v695 = vunpack.c.h.b16 %v172
    %v696 = vunpack.c.l.b16 %v173
    %v697 = vunpack.c.h.b16 %v173
    %v698 = vunpack.c.l.b16 %v174
    %v699 = vunpack.c.h.b16 %v174
    %v700 = vunpack.c.l.b16 %v175
    %v701 = vunpack.c.h.b16 %v175
    %v702 = vunpack.c.l.b16 %v176
    %v703 = vunpack.c.h.b16 %v176
    %v704 = vunpack.c.l.b16 %v177
    %v705 = vunpack.c.h.b16 %v177
    %v706 = vunpack.c.l.b16 %v178
    %v707 = vunpack.c.h.b16 %v178
    %v708 = vunpack.c.l.b16 %v179
    %v709 = vunpack.c.h.b16 %v179
    %v710 = vunpack.c.l.b16 %v180
    %v711 = vunpack.c.h.b16 %v180
    %v712 = vunpack.c.l.b16 %v181
    %v713 = vunpack.c.h.b16 %v181
    %v714 = vunpack.c.l.b16 %v182
    %v715 = vunpack.c.h.b16 %v182
    %v716 = vunpack.c.l.b16 %v183
    %v717 = vunpack.c.h.b16 %v183
    %v718 = vunpack.c.l.b16 %v184
    %v719 = vunpack.c.h.b16 %v184
    %v720 = vunpack.c.l.b16 %v185
    %v721 = vunpack.c.h.b16 %v185
    %v722 = vunpack.c.l.b16 %v186
    %v723 = vunpack.c.h.b16 %v186
    %v724 = vunpack.c.l.b16 %v187
    %v725 = vunpack.c.h.b16 %v187
    %v726 = vunpack.c.l.b16 %v188
    %v727 = vunpack.c.h.b16 %v188
    %v728 = vunpack.c.l.b16 %v189
    %v729 = vunpack.c.h.b16 %v189
    %v730 = vunpack.c.l.b16 %v190
    %v731 = vunpack.c.h.b16 %v190
    %v732 = vunpack.c.l.b16 %v191
    %v733 = vunpack.c.h.b16 %v191
    %v734 = vunpack.c.l.b16 %v192
    %v735 = vunpack.c.h.b16 %v192
    %v736 = vunpack.c.l.b16 %v193
    %v737 = vunpack.c.h.b16 %v193
    %v738 = vunpack.c.l.b16 %v194
    %v739 = vunpack.c.h.b16 %v194
    %v740 = vunpack.c.l.b16 %v195
    %v741 = vunpack.c.h.b16 %v195
    %v742 = vunpack.c.l.b16 %v196
    %v743 = vunpack.c.h.b16 %v196
    %v744 = vunpack.c.l.b16 %v197
    %v745 = vunpack.c.h.b16 %v197
    %v746 = vunpack.c.l.b16 %v198
    %v747 = vunpack.c.h.b16 %v198
    %v748 = vunpack.c.l.b16 %v199
    %v749 = vunpack.c.h.b16 %v199
    %v750 = vunpack.c.l.b16 %v200
    %v751 = vunpack.c.h.b16 %v200
    %v752 = vunpack.c.l.b16 %v201
    %v753 = vunpack.c.h.b16 %v201
    %v754 = vunpack.c.l.b16 %v202
    %v755 = vunpack.c.h.b16 %v202
    %v756 = vunpack.c.l.b16 %v203
    %v757 = vunpack.c.h.b16 %v203
    %v758 = vunpack.c.l.b16 %v204
    %v759 = vunpack.c.h.b16 %v204
    %v760 = vunpack.c.l.b16 %v205
    %v761 = vunpack.c.h.b16 %v205
    %v762 = vunpack.c.l.b16 %v206
    %v763 = vunpack.c.h.b16 %v206
    %v764 = vunpack.c.l.b16 %v207
    %v765 = vunpack.c.h.b16 %v207
    %v766 = vunpack.c.l.b16 %v208
    %v767 = vunpack.c.h.b16 %v208
    %v768 = vunpack.c.l.b16 %v209
    %v769 = vunpack.c.h.b16 %v209
    %v770 = vunpack.c.l.b16 %v210
    %v771 = vunpack.c.h.b16 %v210
    %v772 = vunpack.c.l.b16 %v211
    %v773 = vunpack.c.h.b16 %v211
    %v774 = vunpack.c.l.b16 %v212
    %v775 = vunpack.c.h.b16 %v212
    %v776 = vunpack.c.l.b16 %v213
    %v777 = vunpack.c.h.b16 %v213
    %v778 = vunpack.c.l.b16 %v214
    %v779 = vunpack.c.h.b16 %v214
    %v780 = vunpack.c.l.b16 %v215
    %v781 = vunpack.c.h.b16 %v215
    %v782 = vunpack.c.l.b16 %v216
    %v783 = vunpack.c.h.b16 %v216
    %v784 = vunpack.c.l.b16 %v217
    %v785 = vunpack.c.h.b16 %v217
    %v786 = vunpack.c.l.b16 %v218
    %v787 = vunpack.c.h.b16 %v218
    %v788 = vunpack.c.l.b16 %v219
    %v789 = vunpack.c.h.b16 %v219
    %v790 = vunpack.c.l.b16 %v220
    %v791 = vunpack.c.h.b16 %v220
    %v792 = vunpack.c.l.b16 %v221
    %v793 = vunpack.c.h.b16 %v221
    %v794 = vunpack.c.l.b16 %v222
    %v795 = vunpack.c.h.b16 %v222
    %v796 = vunpack.c.l.b16 %v223
    %v797 = vunpack.c.h.b16 %v223
    %v798 = vunpack.c.l.b16 %v224
    %v799 = vunpack.c.h.b16 %v224
    %v800 = vunpack.c.l.b16 %v225
    %v801 = vunpack.c.h.b16 %v225
    %v802 = vunpack.c.l.b16 %v226
    %v803 = vunpack.c.h.b16 %v226
    %v804 = vunpack.c.l.b16 %v227
    %v805 = vunpack.c.h.b16 %v227
    %v806 = vunpack.c.l.b16 %v228
    %v807 = vunpack.c.h.b16 %v228
    %v808 = vunpack.c.l.b16 %v229
    %v809 = vunpack.c.h.b16 %v229
    %v810 = vunpack.c.l.b16 %v230
    %v811 = vunpack.c.h.b16 %v230
    %v812 = vunpack.c.l.b16 %v231
    %v813 = vunpack.c.h.b16 %v231
    %v814 = vunpack.c.l.b16 %v232
    %v815 = vunpack.c.h.b16 %v232
    %v816 = vunpack.c.l.b16 %v233
    %v817 = vunpack.c.h.b16 %v233
    %v818 = vunpack.c.l.b16 %v234
    %v819 = vunpack.c.h.b16 %v234
    %v820 = vunpack.c.l.b16 %v235
    %v821 = vunpack.c.h.b16 %v235
    %v822 = vunpack.c.l.b16 %v236
    %v823 = vunpack.c.h.b16 %v236
    %v824 = vunpack.c.l.b16 %v237
    %v825 = vunpack.c.h.b16 %v237
    %v826 = vunpack.c.l.b16 %v238
    %v827 = vunpack.c.h.b16 %v238
    %v828 = vunpack.c.l.b16 %v239
    %v829 = vunpack.c.h.b16 %v239
    %v830 = vunpack.c.l.b16 %v240
    %v831 = vunpack.c.h.b16 %v240
    %v832 = vunpack.c.l.b16 %v241
    %v833 = vunpack.c.h.b16 %v241
    %v834 = vunpack.c.l.b16 %v242
    %v835 = vunpack.c.h.b16 %v242
    %v836 = vunpack.c.l.b16 %v243
    %v837 = vunpack.c.h.b16 %v243
    %v838 = vunpack.c.l.b16 %v244
    %v839 = vunpack.c.h.b16 %v244
    %v840 = vunpack.c.l.b16 %v245
    %v841 = vunpack.c.h.b16 %v245
    %v842 = vunpack.c.l.b16 %v246
    %v843 = vunpack.c.h.b16 %v246
    %v844 = vunpack.c.l.b16 %v247
    %v845 = vunpack.c.h.b16 %v247
    %v846 = vunpack.c.l.b16 %v248
    %v847 = vunpack.c.h.b16 %v248
    %v848 = vunpack.c.l.b16 %v249
    %v849 = vunpack.c.h.b16 %v249
    %v850 = vunpack.c.l.b16 %v250
    %v851 = vunpack.c.h.b16 %v250
    %v852 = vunpack.c.l.b16 %v251
    %v853 = vunpack.c.h.b16 %v251
    %v854 = vunpack.c.l.b16 %v252
    %v855 = vunpack.c.h.b16 %v252
    %v856 = vunpack.c.l.b16 %v253
    %v857 = vunpack.c.h.b16 %v253
    %v858 = vunpack.c.l.b16 %v254
    %v859 = vunpack.c.h.b16 %v254
    %v860 = vunpack.c.l.b16 %v255
    %v861 = vunpack.c.h.b16 %v255
    %v862 = vunpack.c.l.b16 %v256
    %v863 = vunpack.c.h.b16 %v256
    %v864 = vunpack.c.l.b16 %v257
    %v865 = vunpack.c.h.b16 %v257
    %v866 = vunpack.c.l.b16 %v258
    %v867 = vunpack.c.h.b16 %v258
    %v868 = vunpack.c.l.b16 %v259
    %v869 = vunpack.c.h.b16 %v259
    %v870 = vunpack.c.l.b16 %v260
    %v871 = vunpack.c.h.b16 %v260
    %v872 = vunpack.c.l.b16 %v261
    %v873 = vunpack.c.h.b16 %v261
    %v874 = vunpack.c.l.b16 %v262
    %v875 = vunpack.c.h.b16 %v262
    %v876 = vunpack.c.l.b16 %v263
    %v877 = vunpack.c.h.b16 %v263
    %v878 = vunpack.c.l.b16 %v264
    %v879 = vunpack.c.h.b16 %v264
    %v880 = vunpack.c.l.b16 %v265
    %v881 = vunpack.c.h.b16 %v265
    %v882 = vunpack.c.l.b16 %v266
    %v883 = vunpack.c.h.b16 %v266
    %v884 = vunpack.c.l.b16 %v267
    %v885 = vunpack.c.h.b16 %v267
    %v886 = vunpack.c.l.b16 %v268
    %v887 = vunpack.c.h.b16 %v268
    %v888 = vunpack.c.l.b16 %v269
    %v889 = vunpack.c.h.b16 %v269
    %v890 = vunpack.c.l.b16 %v270
    %v891 = vunpack.c.h.b16 %v270
    %v892 = vunpack.c.l.b16 %v271
    %v893 = vunpack.c.h.b16 %v271
    %v894 = vunpack.c.l.b16 %v272
    %v895 = vunpack.c.h.b16 %v272
    %v896 = vunpack.c.l.b16 %v273
    %v897 = vunpack.c.h.b16 %v273
    %v898 = vunpack.c.l.b16 %v274
    %v899 = vunpack.c.h.b16 %v274
    %v900 = vunpack.c.l.b16 %v275
    %v901 = vunpack.c.h.b16 %v275
    %v902 = vunpack.c.l.b16 %v276
    %v903 = vunpack.c.h.b16 %v276
    %v904 = vunpack.c.l.b16 %v277
    %v905 = vunpack.c.h.b16 %v277
    %v906 = vunpack.c.l.b16 %v278
    %v907 = vunpack.c.h.b16 %v278
    %v908 = vunpack.c.l.b16 %v279
    %v909 = vunpack.c.h.b16 %v279
    %v910 = vunpack.c.l.b16 %v280
    %v911 = vunpack.c.h.b16 %v280
    %v912 = vunpack.c.l.b16 %v281
    %v913 = vunpack.c.h.b16 %v281
    %v914 = vunpack.c.l.b16 %v282
    %v915 = vunpack.c.h.b16 %v282
    %v916 = vunpack.c.l.b16 %v283
    %v917 = vunpack.c.h.b16 %v283
    %v918 = vunpack.c.l.b16 %v284
    %v919 = vunpack.c.h.b16 %v284
    %v920 = vunpack.c.l.b16 %v285
    %v921 = vunpack.c.h.b16 %v285
    %v922 = vunpack.c.l.b16 %v286
    %v923 = vunpack.c.h.b16 %v286
    %v924 = vunpack.c.l.b16 %v287
    %v925 = vunpack.c.h.b16 %v287
    %v926 = vunpack.c.l.b16 %v288
    %v927 = vunpack.c.h.b16 %v288
    %v928 = vunpack.c.l.b16 %v289
    %v929 = vunpack.c.h.b16 %v289
    %v930 = vunpack.c.l.b16 %v290
    %v931 = vunpack.c.h.b16 %v290
    %v932 = vunpack.c.l.b16 %v291
    %v933 = vunpack.c.h.b16 %v291
    %v934 = vunpack.c.l.b16 %v292
    %v935 = vunpack.c.h.b16 %v292
    %v936 = vunpack.c.l.b16 %v293
    %v937 = vunpack.c.h.b16 %v293
    %v938 = vunpack.c.l.b16 %v294
    %v939 = vunpack.c.h.b16 %v294
    %v940 = vunpack.c.l.b16 %v295
    %v941 = vunpack.c.h.b16 %v295
    %v942 = vunpack.c.l.b16 %v296
    %v943 = vunpack.c.h.b16 %v296
    %v944 = vunpack.c.l.b16 %v297
    %v945 = vunpack.c.h.b16 %v297
    %v946 = vunpack.c.l.b16 %v298
    %v947 = vunpack.c.h.b16 %v298
    %v948 = vunpack.c.l.b16 %v299
    %v949 = vunpack.c.h.b16 %v299
    %v950 = vunpack.c.l.b16 %v300
    %v951 = vunpack.c.h.b16 %v300
    %v952 = vunpack.c.l.b16 %v301
    %v953 = vunpack.c.h.b16 %v301
    %v954 = vunpack.c.l.b16 %v302
    %v955 = vunpack.c.h.b16 %v302
    %v956 = vunpack.c.l.b16 %v303
    %v957 = vunpack.c.h.b16 %v303
    %v958 = vunpack.c.l.b16 %v304
    %v959 = vunpack.c.h.b16 %v304
    %v960 = vunpack.c.l.b16 %v305
    %v961 = vunpack.c.h.b16 %v305
    %v962 = vunpack.c.l.b16 %v306
    %v963 = vunpack.c.h.b16 %v306
    %v964 = vunpack.c.l.b16 %v307
    %v965 = vunpack.c.h.b16 %v307
    %v966 = vunpack.c.l.b16 %v308
    %v967 = vunpack.c.h.b16 %v308
    %v968 = vunpack.c.l.b16 %v309
    %v969 = vunpack.c.h.b16 %v309
    %v970 = vunpack.c.l.b16 %v310
    %v971 = vunpack.c.h.b16 %v310
    %v972 = vunpack.c.l.b16 %v311
    %v973 = vunpack.c.h.b16 %v311
    %v974 = vunpack.c.l.b16 %v312
    %v975 = vunpack.c.h.b16 %v312
    %v976 = vunpack.c.l.b16 %v313
    %v977 = vunpack.c.h.b16 %v313
    %v978 = vunpack.c.l.b16 %v314
    %v979 = vunpack.c.h.b16 %v314
    %v980 = vunpack.c.l.b16 %v315
    %v981 = vunpack.c.h.b16 %v315
    %v982 = vunpack.c.l.b16 %v316
    %v983 = vunpack.c.h.b16 %v316
    %v984 = vunpack.c.l.b16 %v317
    %v985 = vunpack.c.h.b16 %v317
    %v986 = vunpack.c.l.b16 %v318
    %v987 = vunpack.c.h.b16 %v318
    %v988 = vunpack.c.l.b16 %v319
    %v989 = vunpack.c.h.b16 %v319
    %v990 = vpack.c.b16 %v554, %v550
    %v991 = vpack.c.b16 %v555, %v551
    %v992 = vpack.c.b16 %v556, %v552
    %v993 = vpack.c.b16 %v557, %v553
    %v994 = vpack.c.b16 %v562, %v558
    %v995 = vpack.c.b16 %v563, %v559
    %v996 = vpack.c.b16 %v564, %v560
    %v997 = vpack.c.b16 %v565, %v561
    %v998 = vpack.c.b16 %v570, %v566
    %v999 = vpack.c.b16 %v571, %v567
    %v1000 = vpack.c.b16 %v572, %v568
    %v1001 = vpack.c.b16 %v573, %v569
    %v1002 = vpack.c.b16 %v578, %v574
    %v1003 = vpack.c.b16 %v579, %v575
    %v1004 = vpack.c.b16 %v580, %v576
    %v1005 = vpack.c.b16 %v581, %v577
    %v1006 = vpack.c.b16 %v586, %v582
    %v1007 = vpack.c.b16 %v587, %v583
    %v1008 = vpack.c.b16 %v588, %v584
    %v1009 = vpack.c.b16 %v589, %v585
    %v1010 = vpack.c.b16 %v594, %v590
    %v1011 = vpack.c.b16 %v595, %v591
    %v1012 = vpack.c.b16 %v596, %v592
    %v1013 = vpack.c.b16 %v597, %v593
    %v1014 = vpack.c.b16 %v602, %v598
    %v1015 = vpack.c.b16 %v603, %v599
    %v1016 = vpack.c.b16 %v604, %v600
    %v1017 = vpack.c.b16 %v605, %v601
    %v1018 = vpack.c.b16 %v610, %v606
    %v1019 = vpack.c.b16 %v611, %v607
    %v1020 = vpack.c.b16 %v612, %v608
    %v1021 = vpack.c.b16 %v613, %v609
    %v1022 = vpack.c.b16 %v618, %v614
    %v1023 = vpack.c.b16 %v619, %v615
    %v1024 = vpack.c.b16 %v620, %v616
    %v1025 = vpack.c.b16 %v621, %v617
    %v1026 = vpack.c.b16 %v626, %v622
    %v1027 = vpack.c.b16 %v627, %v623
    %v1028 = vpack.c.b16 %v628, %v624
    %v1029 = vpack.c.b16 %v629, %v625
    %v1030 = vpack.c.b16 %v634, %v630
    %v1031 = vpack.c.b16 %v635, %v631
    %v1032 = vpack.c.b16 %v636, %v632
    %v1033 = vpack.c.b16 %v637, %v633
    %v1034 = vpack.c.b16 %v642, %v638
    %v1035 = vpack.c.b16 %v643, %v639
    %v1036 = vpack.c.b16 %v644, %v640
    %v1037 = vpack.c.b16 %v645, %v641
    %v1038 = vpack.c.b16 %v650, %v646
    %v1039 = vpack.c.b16 %v651, %v647
    %v1040 = vpack.c.b16 %v652, %v648
    %v1041 = vpack.c.b16 %v653, %v649
    %v1042 = vpack.c.b16 %v658, %v654
    %v1043 = vpack.c.b16 %v659, %v655
    %v1044 = vpack.c.b16 %v660, %v656
    %v1045 = vpack.c.b16 %v661, %v657
    %v1046 = vpack.c.b16 %v666, %v662
    %v1047 = vpack.c.b16 %v667, %v663
    %v1048 = vpack.c.b16 %v668, %v664
    %v1049 = vpack.c.b16 %v669, %v665
    %v1050 = vpack.c.b16 %v674, %v670
    %v1051 = vpack.c.b16 %v675, %v671
    %v1052 = vpack.c.b16 %v676, %v672
    %v1053 = vpack.c.b16 %v677, %v673
    %v1054 = vpack.c.b16 %v682, %v678
    %v1055 = vpack.c.b16 %v683, %v679
    %v1056 = vpack.c.b16 %v684, %v680
    %v1057 = vpack.c.b16 %v685, %v681
    %v1058 = vpack.c.b16 %v690, %v686
    %v1059 = vpack.c.b16 %v691, %v687
    %v1060 = vpack.c.b16 %v692, %v688
    %v1061 = vpack.c.b16 %v693, %v689
    %v1062 = vpack.c.b16 %v698, %v694
    %v1063 = vpack.c.b16 %v699, %v695
    %v1064 = vpack.c.b16 %v700, %v696
    %v1065 = vpack.c.b16 %v701, %v697
    %v1066 = vpack.c.b16 %v706, %v702
    %v1067 = vpack.c.b16 %v707, %v703
    %v1068 = vpack.c.b16 %v708, %v704
    %v1069 = vpack.c.b16 %v709, %v705
    %v1070 = vpack.c.b16 %v714, %v710
    %v1071 = vpack.c.b16 %v715, %v711
    %v1072 = vpack.c.b16 %v716, %v712
    %v1073 = vpack.c.b16 %v717, %v713
    %v1074 = vpack.c.b16 %v722, %v718
    %v1075 = vpack.c.b16 %v723, %v719
    %v1076 = vpack.c.b16 %v724, %v720
    %v1077 = vpack.c.b16 %v725, %v721
    %v1078 = vpack.c.b16 %v730, %v726
    %v1079 = vpack.c.b16 %v731, %v727
    %v1080 = vpack.c.b16 %v732, %v728
    %v1081 = vpack.c.b16 %v733, %v729
    %v1082 = vpack.c.b16 %v738, %v734
    %v1083 = vpack.c.b16 %v739, %v735
    %v1084 = vpack.c.b16 %v740, %v736
    %v1085 = vpack.c.b16 %v741, %v737
    %v1086 = vpack.c.b16 %v746, %v742
    %v1087 = vpack.c.b16 %v747, %v743
    %v1088 = vpack.c.b16 %v748, %v744
    %v1089 = vpack.c.b16 %v749, %v745
    %v1090 = vpack.c.b16 %v754, %v750
    %v1091 = vpack.c.b16 %v755, %v751
    %v1092 = vpack.c.b16 %v756, %v752
    %v1093 = vpack.c.b16 %v757, %v753
    %v1094 = vpack.c.b16 %v762, %v758
    %v1095 = vpack.c.b16 %v763, %v759
    %v1096 = vpack.c.b16 %v764, %v760
    %v1097 = vpack.c.b16 %v765, %v761
    %v1098 = vpack.c.b16 %v770, %v766
    %v1099 = vpack.c.b16 %v771, %v767
    %v1100 = vpack.c.b16 %v772, %v768
    %v1101 = vpack.c.b16 %v773, %v769
    %v1102 = vpack.c.b16 %v778, %v774
    %v1103 = vpack.c.b16 %v779, %v775
    %v1104 = vpack.c.b16 %v780, %v776
    %v1105 = vpack.c.b16 %v781, %v777
    %v1106 = vpack.c.b16 %v786, %v782
    %v1107 = vpack.c.b16 %v787, %v783
    %v1108 = vpack.c.b16 %v788, %v784
    %v1109 = vpack.c.b16 %v789, %v785
    %v1110 = vpack.c.b16 %v794, %v790
    %v1111 = vpack.c.b16 %v795, %v791
    %v1112 = vpack.c.b16 %v796, %v792
    %v1113 = vpack.c.b16 %v797, %v793
    %v1114 = vpack.c.b16 %v802, %v798
    %v1115 = vpack.c.b16 %v803, %v799
    %v1116 = vpack.c.b16 %v804, %v800
    %v1117 = vpack.c.b16 %v805, %v801
    %v1118 = vpack.c.b16 %v810, %v806
    %v1119 = vpack.c.b16 %v811, %v807
    %v1120 = vpack.c.b16 %v812, %v808
    %v1121 = vpack.c.b16 %v813, %v809
    %v1122 = vpack.c.b16 %v818, %v814
    %v1123 = vpack.c.b16 %v819, %v815
    %v1124 = vpack.c.b16 %v820, %v816
    %v1125 = vpack.c.b16 %v821, %v817
    %v1126 = vpack.c.b16 %v826, %v822
    %v1127 = vpack.c.b16 %v827, %v823
    %v1128 = vpack.c.b16 %v828, %v824
    %v1129 = vpack.c.b16 %v829, %v825
    %v1130 = vpack.c.b16 %v834, %v830
    %v1131 = vpack.c.b16 %v835, %v831
    %v1132 = vpack.c.b16 %v836, %v832
    %v1133 = vpack.c.b16 %v837, %v833
    %v1134 = vpack.c.b16 %v842, %v838
    %v1135 = vpack.c.b16 %v843, %v839
    %v1136 = vpack.c.b16 %v844, %v840
    %v1137 = vpack.c.b16 %v845, %v841
    %v1138 = vpack.c.b16 %v850, %v846
    %v1139 = vpack.c.b16 %v851, %v847
    %v1140 = vpack.c.b16 %v852, %v848
    %v1141 = vpack.c.b16 %v853, %v849
    %v1142 = vpack.c.b16 %v858, %v854
    %v1143 = vpack.c.b16 %v859, %v855
    %v1144 = vpack.c.b16 %v860, %v856
    %v1145 = vpack.c.b16 %v861, %v857
    %v1146 = vpack.c.b16 %v866, %v862
    %v1147 = vpack.c.b16 %v867, %v863
    %v1148 = vpack.c.b16 %v868, %v864
    %v1149 = vpack.c.b16 %v869, %v865
    %v1150 = vpack.c.b16 %v874, %v870
    %v1151 = vpack.c.b16 %v875, %v871
    %v1152 = vpack.c.b16 %v876, %v872
    %v1153 = vpack.c.b16 %v877, %v873
    %v1154 = vpack.c.b16 %v882, %v878
    %v1155 = vpack.c.b16 %v883, %v879
    %v1156 = vpack.c.b16 %v884, %v880
    %v1157 = vpack.c.b16 %v885, %v881
    %v1158 = vpack.c.b16 %v890, %v886
    %v1159 = vpack.c.b16 %v891, %v887
    %v1160 = vpack.c.b16 %v892, %v888
    %v1161 = vpack.c.b16 %v893, %v889
    %v1162 = vpack.c.b16 %v898, %v894
    %v1163 = vpack.c.b16 %v899, %v895
    %v1164 = vpack.c.b16 %v900, %v896
    %v1165 = vpack.c.b16 %v901, %v897
    %v1166 = vpack.c.b16 %v906, %v902
    %v1167 = vpack.c.b16 %v907, %v903
    %v1168 = vpack.c.b16 %v908, %v904
    %v1169 = vpack.c.b16 %v909, %v905
    %v1170 = vpack.c.b16 %v914, %v910
    %v1171 = vpack.c.b16 %v915, %v911
    %v1172 = vpack.c.b16 %v916, %v912
    %v1173 = vpack.c.b16 %v917, %v913
    %v1174 = vpack.c.b16 %v922, %v918
    %v1175 = vpack.c.b16 %v923, %v919
    %v1176 = vpack.c.b16 %v924, %v920
    %v1177 = vpack.c.b16 %v925, %v921
    %v1178 = vpack.c.b16 %v930, %v926
    %v1179 = vpack.c.b16 %v931, %v927
    %v1180 = vpack.c.b16 %v932, %v928
    %v1181 = vpack.c.b16 %v933, %v929
    %v1182 = vpack.c.b16 %v938, %v934
    %v1183 = vpack.c.b16 %v939, %v935
    %v1184 = vpack.c.b16 %v940, %v936
    %v1185 = vpack.c.b16 %v941, %v937
    %v1186 = vpack.c.b16 %v946, %v942
    %v1187 = vpack.c.b16 %v947, %v943
    %v1188 = vpack.c.b16 %v948, %v944
    %v1189 = vpack.c.b16 %v949, %v945
    %v1190 = vpack.c.b16 %v954, %v950
    %v1191 = vpack.c.b16 %v955, %v951
    %v1192 = vpack.c.b16 %v956, %v952
    %v1193 = vpack.c.b16 %v957, %v953
    %v1194 = vpack.c.b16 %v962, %v958
    %v1195 = vpack.c.b16 %v963, %v959
    %v1196 = vpack.c.b16 %v964, %v960
    %v1197 = vpack.c.b16 %v965, %v961
    %v1198 = vpack.c.b16 %v970, %v966
    %v1199 = vpack.c.b16 %v971, %v967
    %v1200 = vpack.c.b16 %v972, %v968
    %v1201 = vpack.c.b16 %v973, %v969
    %v1202 = vpack.c.b16 %v978, %v974
    %v1203 = vpack.c.b16 %v979, %v975
    %v1204 = vpack.c.b16 %v980, %v976
    %v1205 = vpack.c.b16 %v981, %v977
    %v1206 = vpack.c.b16 %v986, %v982
    %v1207 = vpack.c.b16 %v987, %v983
    %v1208 = vpack.c.b16 %v988, %v984
    %v1209 = vpack.c.b16 %v989, %v985
    %vm1430 = vcmask 916480
    %v1432 = vsel %vm1430, %v99, 0
    %1434 = vmatpush.bf16.msra.mxu0 %v1018
    %1435 = vmatpush.bf16.msra.mxu0 %v1014
    %1436 = vmatpush.bf16.msra.mxu0 %v1010
    %1437 = vmatpush.bf16.msra.mxu0 %v1006
    %1438 = vmatpush.bf16.msra.mxu0 %v1002
    %1439 = vmatpush.bf16.msra.mxu0 %v998
    %1440 = vmatpush.bf16.msra.mxu0 %v994
    %1441 = vmatpush.bf16.msra.mxu0 %v990
    %1442 = vmatmul.bf16.gmra.mxu0 %v93
    %v1443 = vpop.f32.mrf.mxu0
    %v1444 = vadd.f32 %v322, %v1443
    %v1445 = vpop.f32.mrf.mxu0
    %1446 = vdwg.mxu0
    %1447 = vmatpush.bf16.msra.mxu0 %v1050
    %1448 = vmatpush.bf16.msra.mxu0 %v1046
    %1449 = vmatpush.bf16.msra.mxu0 %v1042
    %1450 = vmatpush.bf16.msra.mxu0 %v1038
    %1451 = vmatpush.bf16.msra.mxu0 %v1034
    %1452 = vmatpush.bf16.msra.mxu0 %v1030
    %1453 = vmatpush.bf16.msra.mxu0 %v1026
    %1454 = vmatpush.bf16.msra.mxu0 %v1022
    %1455 = vmatmul.bf16.gmra.mxu0 %v94
    %v1456 = vpop.f32.mrf.mxu0
    %v1457 = vadd.f32 %v1444, %v1456
    %v1458 = vpop.f32.mrf.mxu0
    %1459 = vdwg.mxu0
    %1460 = vmatpush.bf16.msra.mxu0 %v1082
    %1461 = vmatpush.bf16.msra.mxu0 %v1078
    %1462 = vmatpush.bf16.msra.mxu0 %v1074
    %1463 = vmatpush.bf16.msra.mxu0 %v1070
    %1464 = vmatpush.bf16.msra.mxu0 %v1066
    %1465 = vmatpush.bf16.msra.mxu0 %v1062
    %1466 = vmatpush.bf16.msra.mxu0 %v1058
    %1467 = vmatpush.bf16.msra.mxu0 %v1054
    %1468 = vmatmul.bf16.gmra.mxu0 %v95
    %v1469 = vpop.f32.mrf.mxu0
    %v1470 = vadd.f32 %v1457, %v1469
    %v1471 = vpop.f32.mrf.mxu0
    %1472 = vdwg.mxu0
    %1473 = vmatpush.bf16.msra.mxu0 %v1114
    %1474 = vmatpush.bf16.msra.mxu0 %v1110
    %1475 = vmatpush.bf16.msra.mxu0 %v1106
    %1476 = vmatpush.bf16.msra.mxu0 %v1102
    %1477 = vmatpush.bf16.msra.mxu0 %v1098
    %1478 = vmatpush.bf16.msra.mxu0 %v1094
    %1479 = vmatpush.bf16.msra.mxu0 %v1090
    %1480 = vmatpush.bf16.msra.mxu0 %v1086
    %1481 = vmatmul.bf16.gmra.mxu0 %v96
    %v1482 = vpop.f32.mrf.mxu0
    %v1483 = vadd.f32 %v1470, %v1482
    %v1484 = vpop.f32.mrf.mxu0
    %1485 = vdwg.mxu0
    %1486 = vmatpush.bf16.msra.mxu0 %v1146
    %1487 = vmatpush.bf16.msra.mxu0 %v1142
    %1488 = vmatpush.bf16.msra.mxu0 %v1138
    %1489 = vmatpush.bf16.msra.mxu0 %v1134
    %1490 = vmatpush.bf16.msra.mxu0 %v1130
    %1491 = vmatpush.bf16.msra.mxu0 %v1126
    %1492 = vmatpush.bf16.msra.mxu0 %v1122
    %1493 = vmatpush.bf16.msra.mxu0 %v1118
    %1494 = vmatmul.bf16.gmra.mxu0 %v97
    %v1495 = vpop.f32.mrf.mxu0
    %v1496 = vadd.f32 %v1483, %v1495
    %v1497 = vpop.f32.mrf.mxu0
    %1498 = vdwg.mxu0
    %1499 = vmatpush.bf16.msra.mxu0 %v1178
    %1500 = vmatpush.bf16.msra.mxu0 %v1174
    %1501 = vmatpush.bf16.msra.mxu0 %v1170
    %1502 = vmatpush.bf16.msra.mxu0 %v1166
    %1503 = vmatpush.bf16.msra.mxu0 %v1162
    %1504 = vmatpush.bf16.msra.mxu0 %v1158
    %1505 = vmatpush.bf16.msra.mxu0 %v1154
    %1506 = vmatpush.bf16.msra.mxu0 %v1150
    %1507 = vmatmul.bf16.gmra.mxu0 %v98
    %v1508 = vpop.f32.mrf.mxu0
    %v1509 = vadd.f32 %v1496, %v1508
    %v1510 = vpop.f32.mrf.mxu0
    %1511 = vdwg.mxu0
    %1512 = vmatpush.bf16.msra.mxu0 0
    %1513 = vmatpush.bf16.msra.mxu0 %v1206
    %1514 = vmatpush.bf16.msra.mxu0 %v1202
    %1515 = vmatpush.bf16.msra.mxu0 %v1198
    %1516 = vmatpush.bf16.msra.mxu0 %v1194
    %1517 = vmatpush.bf16.msra.mxu0 %v1190
    %1518 = vmatpush.bf16.msra.mxu0 %v1186
    %1519 = vmatpush.bf16.msra.mxu0 %v1182
    %1520 = vmatmul.bf16.gmra.mxu0 %v1432
    %v1521 = vpop.f32.mrf.mxu0
    %v1522 = vadd.f32 %v1509, %v1521
    %v1523 = vpop.f32.mrf.mxu0
    %1524 = vdwg.mxu0
    %1525 = vmatpush.bf16.msra.mxu0 %v1019
    %1526 = vmatpush.bf16.msra.mxu0 %v1015
    %1527 = vmatpush.bf16.msra.mxu0 %v1011
    %1528 = vmatpush.bf16.msra.mxu0 %v1007
    %1529 = vmatpush.bf16.msra.mxu0 %v1003
    %1530 = vmatpush.bf16.msra.mxu0 %v999
    %1531 = vmatpush.bf16.msra.mxu0 %v995
    %1532 = vmatpush.bf16.msra.mxu0 %v991
    %1533 = vmatmul.bf16.gmra.mxu0 %v93
    %v1534 = vpop.f32.mrf.mxu0
    %v1535 = vadd.f32 %v323, %v1534
    %v1536 = vpop.f32.mrf.mxu0
    %1537 = vdwg.mxu0
    %1538 = vmatpush.bf16.msra.mxu0 %v1051
    %1539 = vmatpush.bf16.msra.mxu0 %v1047
    %1540 = vmatpush.bf16.msra.mxu0 %v1043
    %1541 = vmatpush.bf16.msra.mxu0 %v1039
    %1542 = vmatpush.bf16.msra.mxu0 %v1035
    %1543 = vmatpush.bf16.msra.mxu0 %v1031
    %1544 = vmatpush.bf16.msra.mxu0 %v1027
    %1545 = vmatpush.bf16.msra.mxu0 %v1023
    %1546 = vmatmul.bf16.gmra.mxu0 %v94
    %v1547 = vpop.f32.mrf.mxu0
    %v1548 = vadd.f32 %v1535, %v1547
    %v1549 = vpop.f32.mrf.mxu0
    %1550 = vdwg.mxu0
    %1551 = vmatpush.bf16.msra.mxu0 %v1083
    %1552 = vmatpush.bf16.msra.mxu0 %v1079
    %1553 = vmatpush.bf16.msra.mxu0 %v1075
    %1554 = vmatpush.bf16.msra.mxu0 %v1071
    %1555 = vmatpush.bf16.msra.mxu0 %v1067
    %1556 = vmatpush.bf16.msra.mxu0 %v1063
    %1557 = vmatpush.bf16.msra.mxu0 %v1059
    %1558 = vmatpush.bf16.msra.mxu0 %v1055
    %1559 = vmatmul.bf16.gmra.mxu0 %v95
    %v1560 = vpop.f32.mrf.mxu0
    %v1561 = vadd.f32 %v1548, %v1560
    %v1562 = vpop.f32.mrf.mxu0
    %1563 = vdwg.mxu0
    %1564 = vmatpush.bf16.msra.mxu0 %v1115
    %1565 = vmatpush.bf16.msra.mxu0 %v1111
    %1566 = vmatpush.bf16.msra.mxu0 %v1107
    %1567 = vmatpush.bf16.msra.mxu0 %v1103
    %1568 = vmatpush.bf16.msra.mxu0 %v1099
    %1569 = vmatpush.bf16.msra.mxu0 %v1095
    %1570 = vmatpush.bf16.msra.mxu0 %v1091
    %1571 = vmatpush.bf16.msra.mxu0 %v1087
    %1572 = vmatmul.bf16.gmra.mxu0 %v96
    %v1573 = vpop.f32.mrf.mxu0
    %v1574 = vadd.f32 %v1561, %v1573
    %v1575 = vpop.f32.mrf.mxu0
    %1576 = vdwg.mxu0
    %1577 = vmatpush.bf16.msra.mxu0 %v1147
    %1578 = vmatpush.bf16.msra.mxu0 %v1143
    %1579 = vmatpush.bf16.msra.mxu0 %v1139
    %1580 = vmatpush.bf16.msra.mxu0 %v1135
    %1581 = vmatpush.bf16.msra.mxu0 %v1131
    %1582 = vmatpush.bf16.msra.mxu0 %v1127
    %1583 = vmatpush.bf16.msra.mxu0 %v1123
    %1584 = vmatpush.bf16.msra.mxu0 %v1119
    %1585 = vmatmul.bf16.gmra.mxu0 %v97
    %v1586 = vpop.f32.mrf.mxu0
    %v1587 = vadd.f32 %v1574, %v1586
    %v1588 = vpop.f32.mrf.mxu0
    %1589 = vdwg.mxu0
    %1590 = vmatpush.bf16.msra.mxu0 %v1179
    %1591 = vmatpush.bf16.msra.mxu0 %v1175
    %1592 = vmatpush.bf16.msra.mxu0 %v1171
    %1593 = vmatpush.bf16.msra.mxu0 %v1167
    %1594 = vmatpush.bf16.msra.mxu0 %v1163
    %1595 = vmatpush.bf16.msra.mxu0 %v1159
    %1596 = vmatpush.bf16.msra.mxu0 %v1155
    %1597 = vmatpush.bf16.msra.mxu0 %v1151
    %1598 = vmatmul.bf16.gmra.mxu0 %v98
    %v1599 = vpop.f32.mrf.mxu0
    %v1600 = vadd.f32 %v1587, %v1599
    %v1601 = vpop.f32.mrf.mxu0
    %1602 = vdwg.mxu0
    %1603 = vmatpush.bf16.msra.mxu0 0
    %1604 = vmatpush.bf16.msra.mxu0 %v1207
    %1605 = vmatpush.bf16.msra.mxu0 %v1203
    %1606 = vmatpush.bf16.msra.mxu0 %v1199
    %1607 = vmatpush.bf16.msra.mxu0 %v1195
    %1608 = vmatpush.bf16.msra.mxu0 %v1191
    %1609 = vmatpush.bf16.msra.mxu0 %v1187
    %1610 = vmatpush.bf16.msra.mxu0 %v1183
    %1611 = vmatmul.bf16.gmra.mxu0 %v1432
    %v1612 = vpop.f32.mrf.mxu0
    %v1613 = vadd.f32 %v1600, %v1612
    %v1614 = vpop.f32.mrf.mxu0
    %1615 = vdwg.mxu0
    %1616 = vmatpush.bf16.msra.mxu0 %v1020
    %1617 = vmatpush.bf16.msra.mxu0 %v1016
    %1618 = vmatpush.bf16.msra.mxu0 %v1012
    %1619 = vmatpush.bf16.msra.mxu0 %v1008
    %1620 = vmatpush.bf16.msra.mxu0 %v1004
    %1621 = vmatpush.bf16.msra.mxu0 %v1000
    %1622 = vmatpush.bf16.msra.mxu0 %v996
    %1623 = vmatpush.bf16.msra.mxu0 %v992
    %1624 = vmatmul.bf16.gmra.mxu0 %v93
    %v1625 = vpop.f32.mrf.mxu0
    %v1626 = vadd.f32 %v324, %v1625
    %v1627 = vpop.f32.mrf.mxu0
    %1628 = vdwg.mxu0
    %1629 = vmatpush.bf16.msra.mxu0 %v1052
    %1630 = vmatpush.bf16.msra.mxu0 %v1048
    %1631 = vmatpush.bf16.msra.mxu0 %v1044
    %1632 = vmatpush.bf16.msra.mxu0 %v1040
    %1633 = vmatpush.bf16.msra.mxu0 %v1036
    %1634 = vmatpush.bf16.msra.mxu0 %v1032
    %1635 = vmatpush.bf16.msra.mxu0 %v1028
    %1636 = vmatpush.bf16.msra.mxu0 %v1024
    %1637 = vmatmul.bf16.gmra.mxu0 %v94
    %v1638 = vpop.f32.mrf.mxu0
    %v1639 = vadd.f32 %v1626, %v1638
    %v1640 = vpop.f32.mrf.mxu0
    %1641 = vdwg.mxu0
    %1642 = vmatpush.bf16.msra.mxu0 %v1084
    %1643 = vmatpush.bf16.msra.mxu0 %v1080
    %1644 = vmatpush.bf16.msra.mxu0 %v1076
    %1645 = vmatpush.bf16.msra.mxu0 %v1072
    %1646 = vmatpush.bf16.msra.mxu0 %v1068
    %1647 = vmatpush.bf16.msra.mxu0 %v1064
    %1648 = vmatpush.bf16.msra.mxu0 %v1060
    %1649 = vmatpush.bf16.msra.mxu0 %v1056
    %1650 = vmatmul.bf16.gmra.mxu0 %v95
    %v1651 = vpop.f32.mrf.mxu0
    %v1652 = vadd.f32 %v1639, %v1651
    %v1653 = vpop.f32.mrf.mxu0
    %1654 = vdwg.mxu0
    %1655 = vmatpush.bf16.msra.mxu0 %v1116
    %1656 = vmatpush.bf16.msra.mxu0 %v1112
    %1657 = vmatpush.bf16.msra.mxu0 %v1108
    %1658 = vmatpush.bf16.msra.mxu0 %v1104
    %1659 = vmatpush.bf16.msra.mxu0 %v1100
    %1660 = vmatpush.bf16.msra.mxu0 %v1096
    %1661 = vmatpush.bf16.msra.mxu0 %v1092
    %1662 = vmatpush.bf16.msra.mxu0 %v1088
    %1663 = vmatmul.bf16.gmra.mxu0 %v96
    %v1664 = vpop.f32.mrf.mxu0
    %v1665 = vadd.f32 %v1652, %v1664
    %v1666 = vpop.f32.mrf.mxu0
    %1667 = vdwg.mxu0
    %1668 = vmatpush.bf16.msra.mxu0 %v1148
    %1669 = vmatpush.bf16.msra.mxu0 %v1144
    %1670 = vmatpush.bf16.msra.mxu0 %v1140
    %1671 = vmatpush.bf16.msra.mxu0 %v1136
    %1672 = vmatpush.bf16.msra.mxu0 %v1132
    %1673 = vmatpush.bf16.msra.mxu0 %v1128
    %1674 = vmatpush.bf16.msra.mxu0 %v1124
    %1675 = vmatpush.bf16.msra.mxu0 %v1120
    %1676 = vmatmul.bf16.gmra.mxu0 %v97
    %v1677 = vpop.f32.mrf.mxu0
    %v1678 = vadd.f32 %v1665, %v1677
    %v1679 = vpop.f32.mrf.mxu0
    %1680 = vdwg.mxu0
    %1681 = vmatpush.bf16.msra.mxu0 %v1180
    %1682 = vmatpush.bf16.msra.mxu0 %v1176
    %1683 = vmatpush.bf16.msra.mxu0 %v1172
    %1684 = vmatpush.bf16.msra.mxu0 %v1168
    %1685 = vmatpush.bf16.msra.mxu0 %v1164
    %1686 = vmatpush.bf16.msra.mxu0 %v1160
    %1687 = vmatpush.bf16.msra.mxu0 %v1156
    %1688 = vmatpush.bf16.msra.mxu0 %v1152
    %1689 = vmatmul.bf16.gmra.mxu0 %v98
    %v1690 = vpop.f32.mrf.mxu0
    %v1691 = vadd.f32 %v1678, %v1690
    %v1692 = vpop.f32.mrf.mxu0
    %1693 = vdwg.mxu0
    %1694 = vmatpush.bf16.msra.mxu0 0
    %1695 = vmatpush.bf16.msra.mxu0 %v1208
    %1696 = vmatpush.bf16.msra.mxu0 %v1204
    %1697 = vmatpush.bf16.msra.mxu0 %v1200
    %1698 = vmatpush.bf16.msra.mxu0 %v1196
    %1699 = vmatpush.bf16.msra.mxu0 %v1192
    %1700 = vmatpush.bf16.msra.mxu0 %v1188
    %1701 = vmatpush.bf16.msra.mxu0 %v1184
    %1702 = vmatmul.bf16.gmra.mxu0 %v1432
    %v1703 = vpop.f32.mrf.mxu0
    %v1704 = vadd.f32 %v1691, %v1703
    %v1705 = vpop.f32.mrf.mxu0
    %1706 = vdwg.mxu0
    %1707 = vmatpush.bf16.msra.mxu0 %v1021
    %1708 = vmatpush.bf16.msra.mxu0 %v1017
    %1709 = vmatpush.bf16.msra.mxu0 %v1013
    %1710 = vmatpush.bf16.msra.mxu0 %v1009
    %1711 = vmatpush.bf16.msra.mxu0 %v1005
    %1712 = vmatpush.bf16.msra.mxu0 %v1001
    %1713 = vmatpush.bf16.msra.mxu0 %v997
    %1714 = vmatpush.bf16.msra.mxu0 %v993
    %1715 = vmatmul.bf16.gmra.mxu0 %v93
    %v1716 = vpop.f32.mrf.mxu0
    %v1717 = vadd.f32 %v325, %v1716
    %v1718 = vpop.f32.mrf.mxu0
    %1719 = vdwg.mxu0
    %1720 = vmatpush.bf16.msra.mxu0 %v1053
    %1721 = vmatpush.bf16.msra.mxu0 %v1049
    %1722 = vmatpush.bf16.msra.mxu0 %v1045
    %1723 = vmatpush.bf16.msra.mxu0 %v1041
    %1724 = vmatpush.bf16.msra.mxu0 %v1037
    %1725 = vmatpush.bf16.msra.mxu0 %v1033
    %1726 = vmatpush.bf16.msra.mxu0 %v1029
    %1727 = vmatpush.bf16.msra.mxu0 %v1025
    %1728 = vmatmul.bf16.gmra.mxu0 %v94
    %v1729 = vpop.f32.mrf.mxu0
    %v1730 = vadd.f32 %v1717, %v1729
    %v1731 = vpop.f32.mrf.mxu0
    %1732 = vdwg.mxu0
    %1733 = vmatpush.bf16.msra.mxu0 %v1085
    %1734 = vmatpush.bf16.msra.mxu0 %v1081
    %1735 = vmatpush.bf16.msra.mxu0 %v1077
    %1736 = vmatpush.bf16.msra.mxu0 %v1073
    %1737 = vmatpush.bf16.msra.mxu0 %v1069
    %1738 = vmatpush.bf16.msra.mxu0 %v1065
    %1739 = vmatpush.bf16.msra.mxu0 %v1061
    %1740 = vmatpush.bf16.msra.mxu0 %v1057
    %1741 = vmatmul.bf16.gmra.mxu0 %v95
    %v1742 = vpop.f32.mrf.mxu0
    %v1743 = vadd.f32 %v1730, %v1742
    %v1744 = vpop.f32.mrf.mxu0
    %1745 = vdwg.mxu0
    %1746 = vmatpush.bf16.msra.mxu0 %v1117
    %1747 = vmatpush.bf16.msra.mxu0 %v1113
    %1748 = vmatpush.bf16.msra.mxu0 %v1109
    %1749 = vmatpush.bf16.msra.mxu0 %v1105
    %1750 = vmatpush.bf16.msra.mxu0 %v1101
    %1751 = vmatpush.bf16.msra.mxu0 %v1097
    %1752 = vmatpush.bf16.msra.mxu0 %v1093
    %1753 = vmatpush.bf16.msra.mxu0 %v1089
    %1754 = vmatmul.bf16.gmra.mxu0 %v96
    %v1755 = vpop.f32.mrf.mxu0
    %v1756 = vadd.f32 %v1743, %v1755
    %v1757 = vpop.f32.mrf.mxu0
    %1758 = vdwg.mxu0
    %1759 = vmatpush.bf16.msra.mxu0 %v1149
    %1760 = vmatpush.bf16.msra.mxu0 %v1145
    %1761 = vmatpush.bf16.msra.mxu0 %v1141
    %1762 = vmatpush.bf16.msra.mxu0 %v1137
    %1763 = vmatpush.bf16.msra.mxu0 %v1133
    %1764 = vmatpush.bf16.msra.mxu0 %v1129
    %1765 = vmatpush.bf16.msra.mxu0 %v1125
    %1766 = vmatpush.bf16.msra.mxu0 %v1121
    %1767 = vmatmul.bf16.gmra.mxu0 %v97
    %v1768 = vpop.f32.mrf.mxu0
    %v1769 = vadd.f32 %v1756, %v1768
    %v1770 = vpop.f32.mrf.mxu0
    %1771 = vdwg.mxu0
    %1772 = vmatpush.bf16.msra.mxu0 %v1181
    %1773 = vmatpush.bf16.msra.mxu0 %v1177
    %1774 = vmatpush.bf16.msra.mxu0 %v1173
    %1775 = vmatpush.bf16.msra.mxu0 %v1169
    %1776 = vmatpush.bf16.msra.mxu0 %v1165
    %1777 = vmatpush.bf16.msra.mxu0 %v1161
    %1778 = vmatpush.bf16.msra.mxu0 %v1157
    %1779 = vmatpush.bf16.msra.mxu0 %v1153
    %1780 = vmatmul.bf16.gmra.mxu0 %v98
    %v1781 = vpop.f32.mrf.mxu0
    %v1782 = vadd.f32 %v1769, %v1781
    %v1783 = vpop.f32.mrf.mxu0
    %1784 = vdwg.mxu0
    %1785 = vmatpush.bf16.msra.mxu0 0
    %1786 = vmatpush.bf16.msra.mxu0 %v1209
    %1787 = vmatpush.bf16.msra.mxu0 %v1205
    %1788 = vmatpush.bf16.msra.mxu0 %v1201
    %1789 = vmatpush.bf16.msra.mxu0 %v1197
    %1790 = vmatpush.bf16.msra.mxu0 %v1193
    %1791 = vmatpush.bf16.msra.mxu0 %v1189
    %1792 = vmatpush.bf16.msra.mxu0 %v1185
    %1793 = vmatmul.bf16.gmra.mxu0 %v1432
    %v1794 = vpop.f32.mrf.mxu0
    %v1795 = vadd.f32 %v1782, %v1794
    %v1796 = vpop.f32.mrf.mxu0
    %1797 = vdwg.mxu0
    %v1798 = vmax.f32 %v1522, 0.0
    %v1799 = vmax.f32 %v1613, 0.0
    %v1800 = vmax.f32 %v1704, 0.0
    %v1801 = vmax.f32 %v1795, 0.0
    %v1802 = vpack.c.bf16 %v1798, %v1798
    %v1803 = vpack.c.bf16 %v1799, %v1799
    %v1804 = vpack.c.bf16 %v1800, %v1800
    %v1805 = vpack.c.bf16 %v1801, %v1801
    %v1806 = vld [vmem:[#allocation6] sm:$0xff]
    %v1807 = vld [vmem:[#allocation6 + $0x8] sm:$0xff]
    %v1808 = vld [vmem:[#allocation6 + $0x10] sm:$0xff]
    %v1809 = vld [vmem:[#allocation6 + $0x18] sm:$0xff]
    %v1810 = vld [vmem:[#allocation6 + $0x20] sm:$0xff]
    %v1811 = vld [vmem:[#allocation6 + $0x28] sm:$0xff]
    %v1812 = vld [vmem:[#allocation6 + $0x30] sm:$0xff]
    %v1813 = vld [vmem:[#allocation6 + $0x38] sm:$0xff]
    %v1814 = vld [vmem:[#allocation6 + $0x40] sm:$0xff]
    %v1815 = vld [vmem:[#allocation6 + $0x48] sm:$0xff]
    %v1816 = vld [vmem:[#allocation6 + $0x50] sm:$0xff]
    %v1817 = vld [vmem:[#allocation6 + $0x58] sm:$0xff]
    %v1818 = vld [vmem:[#allocation6 + $0x60] sm:$0xff]
    %v1819 = vld [vmem:[#allocation6 + $0x68] sm:$0xff]
    %v1820 = vld [vmem:[#allocation6 + $0x70] sm:$0xff]
    %v1821 = vld [vmem:[#allocation6 + $0x78] sm:$0xff]
    %v1822 = vld [vmem:[#allocation6 + $0x80] sm:$0xff]
    %v1823 = vld [vmem:[#allocation6 + $0x88] sm:$0xff]
    %v1824 = vld [vmem:[#allocation6 + $0x90] sm:$0xff]
    %v1825 = vld [vmem:[#allocation6 + $0x98] sm:$0xff]
    %v1826 = vld [vmem:[#allocation6 + $0xa0] sm:$0xff]
    %v1827 = vld [vmem:[#allocation6 + $0xa8] sm:$0xff]
    %v1828 = vld [vmem:[#allocation6 + $0xb0] sm:$0xff]
    %v1829 = vld [vmem:[#allocation6 + $0xb8] sm:$0xff]
    %v1830 = vld [vmem:[#allocation6 + $0xc0] sm:$0xff]
    %v1831 = vld [vmem:[#allocation6 + $0xc8] sm:$0xff]
    %v1832 = vld [vmem:[#allocation6 + $0xd0] sm:$0xff]
    %v1833 = vld [vmem:[#allocation6 + $0xd8] sm:$0xff]
    %v1834 = vld [vmem:[#allocation6 + $0xe0] sm:$0xff]
    %v1835 = vld [vmem:[#allocation6 + $0xe8] sm:$0xff]
    %v1836 = vld [vmem:[#allocation6 + $0xf0] sm:$0xff]
    %v1837 = vld [vmem:[#allocation6 + $0xf8] sm:$0xff]
    %v1838 = vld [vmem:[#allocation6 + $0x100] sm:$0xff]
    %v1839 = vld [vmem:[#allocation6 + $0x108] sm:$0xff]
    %v1840 = vld [vmem:[#allocation6 + $0x110] sm:$0xff]
    %v1841 = vld [vmem:[#allocation6 + $0x118] sm:$0xff]
    %v1842 = vld [vmem:[#allocation6 + $0x120] sm:$0xff]
    %v1843 = vld [vmem:[#allocation6 + $0x128] sm:$0xff]
    %v1844 = vld [vmem:[#allocation6 + $0x130] sm:$0xff]
    %v1845 = vld [vmem:[#allocation6 + $0x138] sm:$0xff]
    %v1846 = vld [vmem:[#allocation6 + $0x140] sm:$0xff]
    %v1847 = vld [vmem:[#allocation6 + $0x148] sm:$0xff]
    %v1848 = vld [vmem:[#allocation6 + $0x150] sm:$0xff]
    %v1849 = vld [vmem:[#allocation6 + $0x158] sm:$0xff]
    %v1850 = vld [vmem:[#allocation6 + $0x160] sm:$0xff]
    %v1851 = vld [vmem:[#allocation6 + $0x168] sm:$0xff]
    %v1852 = vld [vmem:[#allocation6 + $0x170] sm:$0xff]
    %v1853 = vld [vmem:[#allocation6 + $0x178] sm:$0xff]
    %v1854 = vld [vmem:[#allocation6 + $0x180] sm:$0xff]
    %v1855 = vld [vmem:[#allocation6 + $0x188] sm:$0xff]
    %v1856 = vld [vmem:[#allocation6 + $0x190] sm:$0xff]
    %v1857 = vld [vmem:[#allocation6 + $0x198] sm:$0xff]
    %v1858 = vld [vmem:[#allocation6 + $0x1a0] sm:$0xff]
    %v1859 = vld [vmem:[#allocation6 + $0x1a8] sm:$0xff]
    %v1860 = vld [vmem:[#allocation6 + $0x1b0] sm:$0xff]
    %v1861 = vld [vmem:[#allocation6 + $0x1b8] sm:$0xff]
    %v1862 = vld [vmem:[#allocation6 + $0x1c0] sm:$0xff]
    %v1863 = vld [vmem:[#allocation6 + $0x1c8] sm:$0xff]
    %v1864 = vld [vmem:[#allocation6 + $0x1d0] sm:$0xff]
    %v1865 = vld [vmem:[#allocation6 + $0x1d8] sm:$0xff]
    %v1866 = vld [vmem:[#allocation6 + $0x1e0] sm:$0xff]
    %v1867 = vld [vmem:[#allocation6 + $0x1e8] sm:$0xff]
    %v1868 = vld [vmem:[#allocation6 + $0x1f0] sm:$0xff]
    %v1869 = vld [vmem:[#allocation6 + $0x1f8] sm:$0xff]
    %v1870 = vld [vmem:[#allocation7 + $0x4] sm:$0x3]
    %v1872 = vperm.slane %v1870, 0
    %v1873 = vperm.slane %v1870, 1
    %v1940 = vunpack.c.l.b16 %v1806
    %v1941 = vunpack.c.h.b16 %v1806
    %v1942 = vunpack.c.l.b16 %v1807
    %v1943 = vunpack.c.h.b16 %v1807
    %v1944 = vunpack.c.l.b16 %v1808
    %v1945 = vunpack.c.h.b16 %v1808
    %v1946 = vunpack.c.l.b16 %v1809
    %v1947 = vunpack.c.h.b16 %v1809
    %v1948 = vunpack.c.l.b16 %v1810
    %v1949 = vunpack.c.h.b16 %v1810
    %v1950 = vunpack.c.l.b16 %v1811
    %v1951 = vunpack.c.h.b16 %v1811
    %v1952 = vunpack.c.l.b16 %v1812
    %v1953 = vunpack.c.h.b16 %v1812
    %v1954 = vunpack.c.l.b16 %v1813
    %v1955 = vunpack.c.h.b16 %v1813
    %v1956 = vunpack.c.l.b16 %v1814
    %v1957 = vunpack.c.h.b16 %v1814
    %v1958 = vunpack.c.l.b16 %v1815
    %v1959 = vunpack.c.h.b16 %v1815
    %v1960 = vunpack.c.l.b16 %v1816
    %v1961 = vunpack.c.h.b16 %v1816
    %v1962 = vunpack.c.l.b16 %v1817
    %v1963 = vunpack.c.h.b16 %v1817
    %v1964 = vunpack.c.l.b16 %v1818
    %v1965 = vunpack.c.h.b16 %v1818
    %v1966 = vunpack.c.l.b16 %v1819
    %v1967 = vunpack.c.h.b16 %v1819
    %v1968 = vunpack.c.l.b16 %v1820
    %v1969 = vunpack.c.h.b16 %v1820
    %v1970 = vunpack.c.l.b16 %v1821
    %v1971 = vunpack.c.h.b16 %v1821
    %v1972 = vunpack.c.l.b16 %v1822
    %v1973 = vunpack.c.h.b16 %v1822
    %v1974 = vunpack.c.l.b16 %v1823
    %v1975 = vunpack.c.h.b16 %v1823
    %v1976 = vunpack.c.l.b16 %v1824
    %v1977 = vunpack.c.h.b16 %v1824
    %v1978 = vunpack.c.l.b16 %v1825
    %v1979 = vunpack.c.h.b16 %v1825
    %v1980 = vunpack.c.l.b16 %v1826
    %v1981 = vunpack.c.h.b16 %v1826
    %v1982 = vunpack.c.l.b16 %v1827
    %v1983 = vunpack.c.h.b16 %v1827
    %v1984 = vunpack.c.l.b16 %v1828
    %v1985 = vunpack.c.h.b16 %v1828
    %v1986 = vunpack.c.l.b16 %v1829
    %v1987 = vunpack.c.h.b16 %v1829
    %v1988 = vunpack.c.l.b16 %v1830
    %v1989 = vunpack.c.h.b16 %v1830
    %v1990 = vunpack.c.l.b16 %v1831
    %v1991 = vunpack.c.h.b16 %v1831
    %v1992 = vunpack.c.l.b16 %v1832
    %v1993 = vunpack.c.h.b16 %v1832
    %v1994 = vunpack.c.l.b16 %v1833
    %v1995 = vunpack.c.h.b16 %v1833
    %v1996 = vunpack.c.l.b16 %v1834
    %v1997 = vunpack.c.h.b16 %v1834
    %v1998 = vunpack.c.l.b16 %v1835
    %v1999 = vunpack.c.h.b16 %v1835
    %v2000 = vunpack.c.l.b16 %v1836
    %v2001 = vunpack.c.h.b16 %v1836
    %v2002 = vunpack.c.l.b16 %v1837
    %v2003 = vunpack.c.h.b16 %v1837
    %v2004 = vunpack.c.l.b16 %v1838
    %v2005 = vunpack.c.h.b16 %v1838
    %v2006 = vunpack.c.l.b16 %v1839
    %v2007 = vunpack.c.h.b16 %v1839
    %v2008 = vunpack.c.l.b16 %v1840
    %v2009 = vunpack.c.h.b16 %v1840
    %v2010 = vunpack.c.l.b16 %v1841
    %v2011 = vunpack.c.h.b16 %v1841
    %v2012 = vunpack.c.l.b16 %v1842
    %v2013 = vunpack.c.h.b16 %v1842
    %v2014 = vunpack.c.l.b16 %v1843
    %v2015 = vunpack.c.h.b16 %v1843
    %v2016 = vunpack.c.l.b16 %v1844
    %v2017 = vunpack.c.h.b16 %v1844
    %v2018 = vunpack.c.l.b16 %v1845
    %v2019 = vunpack.c.h.b16 %v1845
    %v2020 = vunpack.c.l.b16 %v1846
    %v2021 = vunpack.c.h.b16 %v1846
    %v2022 = vunpack.c.l.b16 %v1847
    %v2023 = vunpack.c.h.b16 %v1847
    %v2024 = vunpack.c.l.b16 %v1848
    %v2025 = vunpack.c.h.b16 %v1848
    %v2026 = vunpack.c.l.b16 %v1849
    %v2027 = vunpack.c.h.b16 %v1849
    %v2028 = vunpack.c.l.b16 %v1850
    %v2029 = vunpack.c.h.b16 %v1850
    %v2030 = vunpack.c.l.b16 %v1851
    %v2031 = vunpack.c.h.b16 %v1851
    %v2032 = vunpack.c.l.b16 %v1852
    %v2033 = vunpack.c.h.b16 %v1852
    %v2034 = vunpack.c.l.b16 %v1853
    %v2035 = vunpack.c.h.b16 %v1853
    %v2036 = vunpack.c.l.b16 %v1854
    %v2037 = vunpack.c.h.b16 %v1854
    %v2038 = vunpack.c.l.b16 %v1855
    %v2039 = vunpack.c.h.b16 %v1855
    %v2040 = vunpack.c.l.b16 %v1856
    %v2041 = vunpack.c.h.b16 %v1856
    %v2042 = vunpack.c.l.b16 %v1857
    %v2043 = vunpack.c.h.b16 %v1857
    %v2044 = vunpack.c.l.b16 %v1858
    %v2045 = vunpack.c.h.b16 %v1858
    %v2046 = vunpack.c.l.b16 %v1859
    %v2047 = vunpack.c.h.b16 %v1859
    %v2048 = vunpack.c.l.b16 %v1860
    %v2049 = vunpack.c.h.b16 %v1860
    %v2050 = vunpack.c.l.b16 %v1861
    %v2051 = vunpack.c.h.b16 %v1861
    %v2052 = vunpack.c.l.b16 %v1862
    %v2053 = vunpack.c.h.b16 %v1862
    %v2054 = vunpack.c.l.b16 %v1863
    %v2055 = vunpack.c.h.b16 %v1863
    %v2056 = vunpack.c.l.b16 %v1864
    %v2057 = vunpack.c.h.b16 %v1864
    %v2058 = vunpack.c.l.b16 %v1865
    %v2059 = vunpack.c.h.b16 %v1865
    %v2060 = vunpack.c.l.b16 %v1866
    %v2061 = vunpack.c.h.b16 %v1866
    %v2062 = vunpack.c.l.b16 %v1867
    %v2063 = vunpack.c.h.b16 %v1867
    %v2064 = vunpack.c.l.b16 %v1868
    %v2065 = vunpack.c.h.b16 %v1868
    %v2066 = vunpack.c.l.b16 %v1869
    %v2067 = vunpack.c.h.b16 %v1869
    %v2068 = vpack.c.b16 %v1942, %v1940
    %v2069 = vpack.c.b16 %v1943, %v1941
    %v2070 = vpack.c.b16 %v1946, %v1944
    %v2071 = vpack.c.b16 %v1947, %v1945
    %v2072 = vpack.c.b16 %v1950, %v1948
    %v2073 = vpack.c.b16 %v1951, %v1949
    %v2074 = vpack.c.b16 %v1954, %v1952
    %v2075 = vpack.c.b16 %v1955, %v1953
    %v2076 = vpack.c.b16 %v1958, %v1956
    %v2077 = vpack.c.b16 %v1959, %v1957
    %v2078 = vpack.c.b16 %v1962, %v1960
    %v2079 = vpack.c.b16 %v1963, %v1961
    %v2080 = vpack.c.b16 %v1966, %v1964
    %v2081 = vpack.c.b16 %v1967, %v1965
    %v2082 = vpack.c.b16 %v1970, %v1968
    %v2083 = vpack.c.b16 %v1971, %v1969
    %v2084 = vpack.c.b16 %v1974, %v1972
    %v2085 = vpack.c.b16 %v1975, %v1973
    %v2086 = vpack.c.b16 %v1978, %v1976
    %v2087 = vpack.c.b16 %v1979, %v1977
    %v2088 = vpack.c.b16 %v1982, %v1980
    %v2089 = vpack.c.b16 %v1983, %v1981
    %v2090 = vpack.c.b16 %v1986, %v1984
    %v2091 = vpack.c.b16 %v1987, %v1985
    %v2092 = vpack.c.b16 %v1990, %v1988
    %v2093 = vpack.c.b16 %v1991, %v1989
    %v2094 = vpack.c.b16 %v1994, %v1992
    %v2095 = vpack.c.b16 %v1995, %v1993
    %v2096 = vpack.c.b16 %v1998, %v1996
    %v2097 = vpack.c.b16 %v1999, %v1997
    %v2098 = vpack.c.b16 %v2002, %v2000
    %v2099 = vpack.c.b16 %v2003, %v2001
    %v2100 = vpack.c.b16 %v2006, %v2004
    %v2101 = vpack.c.b16 %v2007, %v2005
    %v2102 = vpack.c.b16 %v2010, %v2008
    %v2103 = vpack.c.b16 %v2011, %v2009
    %v2104 = vpack.c.b16 %v2014, %v2012
    %v2105 = vpack.c.b16 %v2015, %v2013
    %v2106 = vpack.c.b16 %v2018, %v2016
    %v2107 = vpack.c.b16 %v2019, %v2017
    %v2108 = vpack.c.b16 %v2022, %v2020
    %v2109 = vpack.c.b16 %v2023, %v2021
    %v2110 = vpack.c.b16 %v2026, %v2024
    %v2111 = vpack.c.b16 %v2027, %v2025
    %v2112 = vpack.c.b16 %v2030, %v2028
    %v2113 = vpack.c.b16 %v2031, %v2029
    %v2114 = vpack.c.b16 %v2034, %v2032
    %v2115 = vpack.c.b16 %v2035, %v2033
    %v2116 = vpack.c.b16 %v2038, %v2036
    %v2117 = vpack.c.b16 %v2039, %v2037
    %v2118 = vpack.c.b16 %v2042, %v2040
    %v2119 = vpack.c.b16 %v2043, %v2041
    %v2120 = vpack.c.b16 %v2046, %v2044
    %v2121 = vpack.c.b16 %v2047, %v2045
    %v2122 = vpack.c.b16 %v2050, %v2048
    %v2123 = vpack.c.b16 %v2051, %v2049
    %v2124 = vpack.c.b16 %v2054, %v2052
    %v2125 = vpack.c.b16 %v2055, %v2053
    %v2126 = vpack.c.b16 %v2058, %v2056
    %v2127 = vpack.c.b16 %v2059, %v2057
    %v2128 = vpack.c.b16 %v2062, %v2060
    %v2129 = vpack.c.b16 %v2063, %v2061
    %v2130 = vpack.c.b16 %v2066, %v2064
    %v2131 = vpack.c.b16 %v2067, %v2065
    %2196 = vmatpush.bf16.msra.mxu0 %v2082
    %2197 = vmatpush.bf16.msra.mxu0 %v2080
    %2198 = vmatpush.bf16.msra.mxu0 %v2078
    %2199 = vmatpush.bf16.msra.mxu0 %v2076
    %2200 = vmatpush.bf16.msra.mxu0 %v2074
    %2201 = vmatpush.bf16.msra.mxu0 %v2072
    %2202 = vmatpush.bf16.msra.mxu0 %v2070
    %2203 = vmatpush.bf16.msra.mxu0 %v2068
    %2204 = vmatmul.bf16.gmra.mxu0 %v1802
    %v2205 = vpop.f32.mrf.mxu0
    %v2206 = vadd.f32 %v1872, %v2205
    %v2207 = vpop.f32.mrf.mxu0
    %2208 = vdwg.mxu0
    %2209 = vmatpush.bf16.msra.mxu0 %v2098
    %2210 = vmatpush.bf16.msra.mxu0 %v2096
    %2211 = vmatpush.bf16.msra.mxu0 %v2094
    %2212 = vmatpush.bf16.msra.mxu0 %v2092
    %2213 = vmatpush.bf16.msra.mxu0 %v2090
    %2214 = vmatpush.bf16.msra.mxu0 %v2088
    %2215 = vmatpush.bf16.msra.mxu0 %v2086
    %2216 = vmatpush.bf16.msra.mxu0 %v2084
    %2217 = vmatmul.bf16.gmra.mxu0 %v1803
    %v2218 = vpop.f32.mrf.mxu0
    %v2219 = vadd.f32 %v2206, %v2218
    %v2220 = vpop.f32.mrf.mxu0
    %2221 = vdwg.mxu0
    %2222 = vmatpush.bf16.msra.mxu0 %v2114
    %2223 = vmatpush.bf16.msra.mxu0 %v2112
    %2224 = vmatpush.bf16.msra.mxu0 %v2110
    %2225 = vmatpush.bf16.msra.mxu0 %v2108
    %2226 = vmatpush.bf16.msra.mxu0 %v2106
    %2227 = vmatpush.bf16.msra.mxu0 %v2104
    %2228 = vmatpush.bf16.msra.mxu0 %v2102
    %2229 = vmatpush.bf16.msra.mxu0 %v2100
    %2230 = vmatmul.bf16.gmra.mxu0 %v1804
    %v2231 = vpop.f32.mrf.mxu0
    %v2232 = vadd.f32 %v2219, %v2231
    %v2233 = vpop.f32.mrf.mxu0
    %2234 = vdwg.mxu0
    %2235 = vmatpush.bf16.msra.mxu0 %v2130
    %2236 = vmatpush.bf16.msra.mxu0 %v2128
    %2237 = vmatpush.bf16.msra.mxu0 %v2126
    %2238 = vmatpush.bf16.msra.mxu0 %v2124
    %2239 = vmatpush.bf16.msra.mxu0 %v2122
    %2240 = vmatpush.bf16.msra.mxu0 %v2120
    %2241 = vmatpush.bf16.msra.mxu0 %v2118
    %2242 = vmatpush.bf16.msra.mxu0 %v2116
    %2243 = vmatmul.bf16.gmra.mxu0 %v1805
    %v2244 = vpop.f32.mrf.mxu0
    %v2245 = vadd.f32 %v2232, %v2244
    %v2246 = vpop.f32.mrf.mxu0
    %2247 = vdwg.mxu0
    %2248 = vmatpush.bf16.msra.mxu0 %v2083
    %2249 = vmatpush.bf16.msra.mxu0 %v2081
    %2250 = vmatpush.bf16.msra.mxu0 %v2079
    %2251 = vmatpush.bf16.msra.mxu0 %v2077
    %2252 = vmatpush.bf16.msra.mxu0 %v2075
    %2253 = vmatpush.bf16.msra.mxu0 %v2073
    %2254 = vmatpush.bf16.msra.mxu0 %v2071
    %2255 = vmatpush.bf16.msra.mxu0 %v2069
    %2256 = vmatmul.bf16.gmra.mxu0 %v1802
    %v2257 = vpop.f32.mrf.mxu0
    %v2258 = vadd.f32 %v1873, %v2257
    %v2259 = vpop.f32.mrf.mxu0
    %2260 = vdwg.mxu0
    %2261 = vmatpush.bf16.msra.mxu0 %v2099
    %2262 = vmatpush.bf16.msra.mxu0 %v2097
    %2263 = vmatpush.bf16.msra.mxu0 %v2095
    %2264 = vmatpush.bf16.msra.mxu0 %v2093
    %2265 = vmatpush.bf16.msra.mxu0 %v2091
    %2266 = vmatpush.bf16.msra.mxu0 %v2089
    %2267 = vmatpush.bf16.msra.mxu0 %v2087
    %2268 = vmatpush.bf16.msra.mxu0 %v2085
    %2269 = vmatmul.bf16.gmra.mxu0 %v1803
    %v2270 = vpop.f32.mrf.mxu0
    %v2271 = vadd.f32 %v2258, %v2270
    %v2272 = vpop.f32.mrf.mxu0
    %2273 = vdwg.mxu0
    %2274 = vmatpush.bf16.msra.mxu0 %v2115
    %2275 = vmatpush.bf16.msra.mxu0 %v2113
    %2276 = vmatpush.bf16.msra.mxu0 %v2111
    %2277 = vmatpush.bf16.msra.mxu0 %v2109
    %2278 = vmatpush.bf16.msra.mxu0 %v2107
    %2279 = vmatpush.bf16.msra.mxu0 %v2105
    %2280 = vmatpush.bf16.msra.mxu0 %v2103
    %2281 = vmatpush.bf16.msra.mxu0 %v2101
    %2282 = vmatmul.bf16.gmra.mxu0 %v1804
    %v2283 = vpop.f32.mrf.mxu0
    %v2284 = vadd.f32 %v2271, %v2283
    %v2285 = vpop.f32.mrf.mxu0
    %2286 = vdwg.mxu0
    %2287 = vmatpush.bf16.msra.mxu0 %v2131
    %2288 = vmatpush.bf16.msra.mxu0 %v2129
    %2289 = vmatpush.bf16.msra.mxu0 %v2127
    %2290 = vmatpush.bf16.msra.mxu0 %v2125
    %2291 = vmatpush.bf16.msra.mxu0 %v2123
    %2292 = vmatpush.bf16.msra.mxu0 %v2121
    %2293 = vmatpush.bf16.msra.mxu0 %v2119
    %2294 = vmatpush.bf16.msra.mxu0 %v2117
    %2295 = vmatmul.bf16.gmra.mxu0 %v1805
    %v2296 = vpop.f32.mrf.mxu0
    %v2297 = vadd.f32 %v2284, %v2296
    %v2298 = vpop.f32.mrf.mxu0
    %2299 = vdwg.mxu0
    %v2300 = vmax.f32 %v2245, 0.0
    %v2301 = vmax.f32 %v2297, 0.0
    %v2302 = vpack.c.bf16 %v2300, %v2300
    %v2303 = vpack.c.bf16 %v2301, %v2301
    %v2304 = vld [vmem:[%s3] sm:$0xf]
    %v2305 = vld [vmem:[%s3 + $0x4] sm:$0xf]
    %v2306 = vld [vmem:[%s3 + $0x8] sm:$0xf]
    %v2307 = vld [vmem:[%s3 + $0xc] sm:$0xf]
    %v2308 = vld [vmem:[%s3 + $0x10] sm:$0xf]
    %v2309 = vld [vmem:[%s3 + $0x14] sm:$0xf]
    %v2310 = vld [vmem:[%s3 + $0x18] sm:$0xf]
    %v2311 = vld [vmem:[%s3 + $0x1c] sm:$0xf]
    %v2312 = vld [vmem:[%s3 + $0x20] sm:$0xf]
    %v2313 = vld [vmem:[%s3 + $0x24] sm:$0xf]
    %v2314 = vld [vmem:[%s3 + $0x28] sm:$0xf]
    %v2315 = vld [vmem:[%s3 + $0x2c] sm:$0xf]
    %v2316 = vld [vmem:[%s3 + $0x30] sm:$0xf]
    %v2317 = vld [vmem:[%s3 + $0x34] sm:$0xf]
    %v2318 = vld [vmem:[%s3 + $0x38] sm:$0xf]
    %v2319 = vld [vmem:[%s3 + $0x3c] sm:$0xf]
    %v2320 = vld [vmem:[%s3 + $0x40] sm:$0xf]
    %v2321 = vld [vmem:[%s3 + $0x44] sm:$0xf]
    %v2322 = vld [vmem:[%s3 + $0x48] sm:$0xf]
    %v2323 = vld [vmem:[%s3 + $0x4c] sm:$0xf]
    %v2324 = vld [vmem:[%s3 + $0x50] sm:$0xf]
    %v2325 = vld [vmem:[%s3 + $0x54] sm:$0xf]
    %v2326 = vld [vmem:[%s3 + $0x58] sm:$0xf]
    %v2327 = vld [vmem:[%s3 + $0x5c] sm:$0xf]
    %v2328 = vld [vmem:[%s3 + $0x60] sm:$0xf]
    %v2329 = vld [vmem:[%s3 + $0x64] sm:$0xf]
    %v2330 = vld [vmem:[%s3 + $0x68] sm:$0xf]
    %v2331 = vld [vmem:[%s3 + $0x6c] sm:$0xf]
    %v2332 = vld [vmem:[%s3 + $0x70] sm:$0xf]
    %v2333 = vld [vmem:[%s3 + $0x74] sm:$0xf]
    %v2334 = vld [vmem:[%s3 + $0x78] sm:$0xf]
    %v2335 = vld [vmem:[%s3 + $0x7c] sm:$0xf]
    %v2336 = vld [vmem:[#allocation7 + $0x6] sm:$0x1]
    %v2338 = vperm.slane %v2336, 0
    %v2372 = vunpack.c.l.b16 %v2304
    %v2373 = vunpack.c.l.b16 %v2305
    %v2374 = vunpack.c.l.b16 %v2306
    %v2375 = vunpack.c.l.b16 %v2307
    %v2376 = vunpack.c.l.b16 %v2308
    %v2377 = vunpack.c.l.b16 %v2309
    %v2378 = vunpack.c.l.b16 %v2310
    %v2379 = vunpack.c.l.b16 %v2311
    %v2380 = vunpack.c.l.b16 %v2312
    %v2381 = vunpack.c.l.b16 %v2313
    %v2382 = vunpack.c.l.b16 %v2314
    %v2383 = vunpack.c.l.b16 %v2315
    %v2384 = vunpack.c.l.b16 %v2316
    %v2385 = vunpack.c.l.b16 %v2317
    %v2386 = vunpack.c.l.b16 %v2318
    %v2387 = vunpack.c.l.b16 %v2319
    %v2388 = vunpack.c.l.b16 %v2320
    %v2389 = vunpack.c.l.b16 %v2321
    %v2390 = vunpack.c.l.b16 %v2322
    %v2391 = vunpack.c.l.b16 %v2323
    %v2392 = vunpack.c.l.b16 %v2324
    %v2393 = vunpack.c.l.b16 %v2325
    %v2394 = vunpack.c.l.b16 %v2326
    %v2395 = vunpack.c.l.b16 %v2327
    %v2396 = vunpack.c.l.b16 %v2328
    %v2397 = vunpack.c.l.b16 %v2329
    %v2398 = vunpack.c.l.b16 %v2330
    %v2399 = vunpack.c.l.b16 %v2331
    %v2400 = vunpack.c.l.b16 %v2332
    %v2401 = vunpack.c.l.b16 %v2333
    %v2402 = vunpack.c.l.b16 %v2334
    %v2403 = vunpack.c.l.b16 %v2335
    %v2404 = vpack.c.b16 %v2373, %v2372
    %v2405 = vpack.c.b16 %v2375, %v2374
    %v2406 = vpack.c.b16 %v2377, %v2376
    %v2407 = vpack.c.b16 %v2379, %v2378
    %v2408 = vpack.c.b16 %v2381, %v2380
    %v2409 = vpack.c.b16 %v2383, %v2382
    %v2410 = vpack.c.b16 %v2385, %v2384
    %v2411 = vpack.c.b16 %v2387, %v2386
    %v2412 = vpack.c.b16 %v2389, %v2388
    %v2413 = vpack.c.b16 %v2391, %v2390
    %v2414 = vpack.c.b16 %v2393, %v2392
    %v2415 = vpack.c.b16 %v2395, %v2394
    %v2416 = vpack.c.b16 %v2397, %v2396
    %v2417 = vpack.c.b16 %v2399, %v2398
    %v2418 = vpack.c.b16 %v2401, %v2400
    %v2419 = vpack.c.b16 %v2403, %v2402
    %2436 = vmatpush.bf16.msra.mxu0 %v2411
    %2437 = vmatpush.bf16.msra.mxu0 %v2410
    %2438 = vmatpush.bf16.msra.mxu0 %v2409
    %2439 = vmatpush.bf16.msra.mxu0 %v2408
    %2440 = vmatpush.bf16.msra.mxu0 %v2407
    %2441 = vmatpush.bf16.msra.mxu0 %v2406
    %2442 = vmatpush.bf16.msra.mxu0 %v2405
    %2443 = vmatpush.bf16.msra.mxu0 %v2404
    %2444 = vmatmul.bf16.gmra.mxu0 %v2302
    %v2445 = vpop.f32.mrf.mxu0
    %v2446 = vadd.f32 %v2338, %v2445
    %v2447 = vpop.f32.mrf.mxu0
    %2448 = vdwg.mxu0
    %2449 = vmatpush.bf16.msra.mxu0 %v2419
    %2450 = vmatpush.bf16.msra.mxu0 %v2418
    %2451 = vmatpush.bf16.msra.mxu0 %v2417
    %2452 = vmatpush.bf16.msra.mxu0 %v2416
    %2453 = vmatpush.bf16.msra.mxu0 %v2415
    %2454 = vmatpush.bf16.msra.mxu0 %v2414
    %2455 = vmatpush.bf16.msra.mxu0 %v2413
    %2456 = vmatpush.bf16.msra.mxu0 %v2412
    %2457 = vmatmul.bf16.gmra.mxu0 %v2303
    %v2458 = vpop.f32.mrf.mxu0
    %v2459 = vadd.f32 %v2446, %v2458
    %v2460 = vpop.f32.mrf.mxu0
    %2461 = vdwg.mxu0
    %v2462 = vmax.f32 %v2459, 0.0
    %v2463 = vpack.c.bf16 %v2462, %v2462
    %v2464 = vld [vmem:[%s4] sm:$0xf]
    %v2465 = vld [vmem:[%s4 + $0x4] sm:$0xf]
    %v2466 = vld [vmem:[%s4 + $0x8] sm:$0xf]
    %v2467 = vld [vmem:[%s4 + $0xc] sm:$0xf]
    %v2468 = vld [vmem:[%s4 + $0x10] sm:$0xf]
    %v2469 = vld [vmem:[%s4 + $0x14] sm:$0xf]
    %v2470 = vld [vmem:[%s4 + $0x18] sm:$0xf]
    %v2471 = vld [vmem:[%s4 + $0x1c] sm:$0xf]
    %v2472 = vld [vmem:[%s4 + $0x20] sm:$0xf]
    %v2473 = vld [vmem:[%s4 + $0x24] sm:$0xf]
    %v2474 = vld [vmem:[%s4 + $0x28] sm:$0xf]
    %v2475 = vld [vmem:[%s4 + $0x2c] sm:$0xf]
    %v2476 = vld [vmem:[%s4 + $0x30] sm:$0xf]
    %v2477 = vld [vmem:[%s4 + $0x34] sm:$0xf]
    %v2478 = vld [vmem:[%s4 + $0x38] sm:$0xf]
    %v2479 = vld [vmem:[%s4 + $0x3c] sm:$0xf]
    %v2480 = vld [vmem:[#allocation7 + $0x7] sm:$0x1]
    %v2482 = vperm.slane %v2480, 0
    %v2500 = vunpack.c.l.b16 %v2464
    %v2501 = vunpack.c.l.b16 %v2465
    %v2502 = vunpack.c.l.b16 %v2466
    %v2503 = vunpack.c.l.b16 %v2467
    %v2504 = vunpack.c.l.b16 %v2468
    %v2505 = vunpack.c.l.b16 %v2469
    %v2506 = vunpack.c.l.b16 %v2470
    %v2507 = vunpack.c.l.b16 %v2471
    %v2508 = vunpack.c.l.b16 %v2472
    %v2509 = vunpack.c.l.b16 %v2473
    %v2510 = vunpack.c.l.b16 %v2474
    %v2511 = vunpack.c.l.b16 %v2475
    %v2512 = vunpack.c.l.b16 %v2476
    %v2513 = vunpack.c.l.b16 %v2477
    %v2514 = vunpack.c.l.b16 %v2478
    %v2515 = vunpack.c.l.b16 %v2479
    %v2516 = vpack.c.b16 %v2501, %v2500
    %v2517 = vpack.c.b16 %v2503, %v2502
    %v2518 = vpack.c.b16 %v2505, %v2504
    %v2519 = vpack.c.b16 %v2507, %v2506
    %v2520 = vpack.c.b16 %v2509, %v2508
    %v2521 = vpack.c.b16 %v2511, %v2510
    %v2522 = vpack.c.b16 %v2513, %v2512
    %v2523 = vpack.c.b16 %v2515, %v2514
    %2532 = vmatpush.bf16.msra.mxu0 %v2523
    %2533 = vmatpush.bf16.msra.mxu0 %v2522
    %2534 = vmatpush.bf16.msra.mxu0 %v2521
    %2535 = vmatpush.bf16.msra.mxu0 %v2520
    %2536 = vmatpush.bf16.msra.mxu0 %v2519
    %2537 = vmatpush.bf16.msra.mxu0 %v2518
    %2538 = vmatpush.bf16.msra.mxu0 %v2517
    %2539 = vmatpush.bf16.msra.mxu0 %v2516
    %2540 = vmatmul.bf16.gmra.mxu0 %v2463
    %v2541 = vpop.f32.mrf.mxu0
    %v2542 = vadd.f32 %v2482, %v2541
    %v2543 = vpop.f32.mrf.mxu0
    %2544 = vdwg.mxu0
    %v2545 = vmax.f32 %v2542, 0.0
    %v2546 = vpack.c.bf16 %v2545, %v2545
    %v2547 = vld [vmem:[%s5] sm:$0xf]
    %v2548 = vld [vmem:[%s5 + $0x4] sm:$0xf]
    %v2549 = vld [vmem:[%s5 + $0x8] sm:$0xf]
    %v2550 = vld [vmem:[%s5 + $0xc] sm:$0xf]
    %v2551 = vld [vmem:[%s5 + $0x10] sm:$0xf]
    %v2552 = vld [vmem:[%s5 + $0x14] sm:$0xf]
    %v2553 = vld [vmem:[%s5 + $0x18] sm:$0xf]
    %v2554 = vld [vmem:[%s5 + $0x1c] sm:$0xf]
    %v2555 = vld [vmem:[#allocation7 + $0x8] sm:$0x1]
    %v2557 = vperm.slane %v2555, 0
    %v2567 = vunpack.c.l.b16 %v2547
    %v2568 = vunpack.c.l.b16 %v2548
    %v2569 = vunpack.c.l.b16 %v2549
    %v2570 = vunpack.c.l.b16 %v2550
    %v2571 = vunpack.c.l.b16 %v2551
    %v2572 = vunpack.c.l.b16 %v2552
    %v2573 = vunpack.c.l.b16 %v2553
    %v2574 = vunpack.c.l.b16 %v2554
    %v2575 = vpack.c.b16 %v2568, %v2567
    %v2576 = vpack.c.b16 %v2570, %v2569
    %v2577 = vpack.c.b16 %v2572, %v2571
    %v2578 = vpack.c.b16 %v2574, %v2573
    %vm2583 = vcmask 523264
    %v2585 = vsel %vm2583, %v2546, 0
    %2587 = vmatpush.bf16.msra.mxu0 0
    %2588 = vmatpush.bf16.msra.mxu0 0
    %2589 = vmatpush.bf16.msra.mxu0 0
    %2590 = vmatpush.bf16.msra.mxu0 0
    %2591 = vmatpush.bf16.msra.mxu0 %v2578
    %2592 = vmatpush.bf16.msra.mxu0 %v2577
    %2593 = vmatpush.bf16.msra.mxu0 %v2576
    %2594 = vmatpush.bf16.msra.mxu0 %v2575
    %2595 = vmatmul.bf16.gmra.mxu0 %v2585
    %v2596 = vpop.f32.mrf.mxu0
    %v2597 = vadd.f32 %v2557, %v2596
    %v2598 = vpop.f32.mrf.mxu0
    %2599 = vdwg.mxu0
    %v2600 = vxor.u32 %v2597, 2147483648
    %v2601 = vmul.f32 %v2600, 1.442695
    %v2602 = vpow.pop %v2601
    %v2603 = vadd.f32 %v2602, 1.0
    %v2604 = vrcp.pop %v2603
    %v2605 = vmul.f32 %v2603, %v2604
    %v2606 = vsub.f32 1.0, %v2605
    %v2607 = vmul.f32 %v2604, %v2606
    %v2608 = vadd.f32 %v2604, %v2607
    %vm2609 = vweird.f32 %v2603
    %vm2610 = vweird.f32 %v2604
    %vm2611 = vmor %vm2609, %vm2610
    %v2612 = vsel %vm2611, %v2604, %v2608
    %v2613 = vand.u32 2147483647, %v2603
    %vm2614 = vcmp.eq.f32.partialorder %v2613, 8.507059e+37
    %v2615 = vand.u32 %v2603, 2147483648
    %v2616 = vor.u32 1.1754944e-38, %v2615
    %v2617 = vsel %vm2614, %v2616, %v2612
    %v2618 = vmul.f32 1.0, %v2617
    %vm2619 = vcmask 7168
    %2620 = vst.msk [vmem:[%s7] sm:$0xff] %vm2619, %v2618
    // Predicated region
    $region46: #{mlp_att_forward.1} parent=1 // pred_check
      _
    $region47: #{mlp_att_forward.1} parent=1 // pred_check_branch
      %2622 = sbr.rel (0) target = $region49
    $region48: #{mlp_att_forward.1} parent=1 // pred_region
      _
    $region49: #{mlp_att_forward.1} parent=1 // pred_fallthru
      _
    // Predicated region
    $region50: #{mlp_att_forward.1} parent=1 // pred_check
      _
    $region51: #{mlp_att_forward.1} parent=1 // pred_check_branch
      %2624 = sbr.rel (0) target = $region53
    $region52: #{mlp_att_forward.1} parent=1 // pred_region
      _
    $region53: #{mlp_att_forward.1} parent=1 // pred_fallthru
      _
    %2625 = vsyncpa [#allocation3], 1
    %2626 = vsyncpa [#allocation5], 1
    %2627 = vsyncpa [#allocation8], 1

</llo_original>
